<compile_context>
chip_gen: v7x
topology: tpu7x:2x2x1
jax: 0.10.0
libtpu: 0.0.40
codegen_flags: <defaults>
</compile_context>

<pallas_src>
import functools

import jax
import jax.numpy as jnp
from jax import lax
from jax.experimental import pallas as pl
from jax.experimental.pallas import tpu as pltpu


# ----------------------------------------------------------------------------
# Kernel
# ----------------------------------------------------------------------------
def _rand_shift_kernel(x_ref, wy_ref, bxt_ref, o_ref, *, c, h, w, g_pack):
    """One grid step = `block_b` lane-packed "super images".

    A super image packs G = g_pack batch images side by side along the lane
    (last) axis so DMAs, vregs, MXU operands and stores are lane-dense:

      x_ref  : (Bb, c*h, G*w)   input slab; image g occupies lanes [g*w,(g+1)*w),
                                rows are channel-stacked: row = ci*h + y
      wy_ref : (Bb, G*h, h)     per-image row (y) weights, image g in rows
                                [g*h, (g+1)*h);  W[out_row, in_row]
      bxt_ref: (Bb, G*w, G*w)   block-diagonal, already-transposed column (x)
                                weights; diagonal block g = WxT[g]
      o_ref  : (Bb, h, G*c*w)   output slab; image g / channel ci occupies
                                lanes [(g*c + ci)*w, (g*c + ci + 1)*w)
    """
    block_b = x_ref.shape[0]

    def one_super_image(b, carry):
        xs = x_ref[b]                        # (c*h, G*w)   compute dtype
        bxt = bxt_ref[b]                     # (G*w, G*w)   compute dtype
        wyb = wy_ref[b]                      # (G*h, h)     compute dtype

        # ---- x-stage: ONE lane-dense MXU matmul for all G images & channels.
        # K = N = G*w (multiple of 128/256 when the wrapper can arrange it);
        # f32 accumulation via preferred_element_type.
        t = lax.dot_general(xs, bxt, (((1,), (0,)), ((), ())),
                            preferred_element_type=jnp.float32)   # (c*h, G*w)

        # ---- y-stage: Wy differs per image (lane group), so iterate over the
        # G packed images; within an image all channels are merged into ONE
        # matmul by regrouping channel row-blocks onto lanes (static slices +
        # concatenate).  g_pack <= 256 // w is small and the lane slices must
        # be static, so a short static unroll is the right tool here.
        pieces = []
        for g in range(g_pack):
            t_g = t[:, g * w:(g + 1) * w]                          # (c*h, w)
            wide = jnp.concatenate(
                [t_g[ci * h:(ci + 1) * h, :] for ci in range(c)], axis=1)  # (h, c*w)
            wy_g = wyb[g * h:(g + 1) * h, :]                       # (h, h)
            yw = lax.dot_general(wy_g, wide.astype(wy_g.dtype),
                                 (((1,), (0,)), ((), ())),
                                 preferred_element_type=jnp.float32)  # (h, c*w)
            pieces.append(yw)

        # ONE lane-dense store per super image (no per-channel masked stores).
        o_ref[b] = jnp.concatenate(pieces, axis=1).astype(o_ref.dtype)
        return carry

    # fori_loop (not a Python unroll) keeps vreg live ranges bounded when
    # block_b is raised to amortize per-grid-step overhead.
    lax.fori_loop(0, block_b, one_super_image, 0)


# ----------------------------------------------------------------------------
# Interpolation weights (replicate pad + 'zeros' grid_sample folded in)
# ----------------------------------------------------------------------------
def _interp_weights(shift_px, h, pad, transpose=False):
    """Bilinear interpolation matrices acting on the UNPADDED image.

    shift_px: (n,) float32, integer-valued pixel shift in [0, 2*pad].
    Returns (n, h, h): W[out, in] (or W^T[in, out]).  Reproduces torch's
    linspace(-1+eps, 1-eps, H)[:h] + shift*2/H grid, align_corners=False
    unnormalization, padding_mode='zeros' on the replicate-padded image.
    """
    H = h + 2 * pad
    eps = 1.0 / H
    arange = jnp.linspace(-1.0 + eps, 1.0 - eps, H, dtype=jnp.float32)[:h]   # (h,)
    g = arange[None, :] + shift_px[:, None] * (2.0 / H)                      # (n, h)
    pix = (g + 1.0) * H / 2.0 - 0.5          # pixel coords in the *padded* image
    p0 = jnp.floor(pix)
    w1 = pix - p0
    w0 = 1.0 - w1
    p0i = p0.astype(jnp.int32)
    p1i = p0i + 1
    # 'zeros' padding: corners outside the padded extent contribute nothing.
    v0 = ((p0i >= 0) & (p0i <= H - 1)).astype(jnp.float32)
    v1 = ((p1i >= 0) & (p1i <= H - 1)).astype(jnp.float32)
    # Replicate pad folded in: padded column j -> original clamp(j - pad, 0, h-1).
    c0 = jnp.clip(p0i - pad, 0, h - 1)
    c1 = jnp.clip(p1i - pad, 0, h - 1)
    if transpose:
        rows = jnp.arange(h, dtype=jnp.int32)[None, :, None]                 # in index
        oh0 = (c0[:, None, :] == rows).astype(jnp.float32)                   # (n, in, out)
        oh1 = (c1[:, None, :] == rows).astype(jnp.float32)
        return (w0 * v0)[:, None, :] * oh0 + (w1 * v1)[:, None, :] * oh1
    cols = jnp.arange(h, dtype=jnp.int32)[None, None, :]                     # in index
    oh0 = (c0[:, :, None] == cols).astype(jnp.float32)                       # (n, out, in)
    oh1 = (c1[:, :, None] == cols).astype(jnp.float32)
    return (w0 * v0)[:, :, None] * oh0 + (w1 * v1)[:, :, None] * oh1


# ----------------------------------------------------------------------------
# Sizing helpers (lane-padding aware, per perf review)
# ----------------------------------------------------------------------------
def _ceil_to(v, m):
    return -(-v // m) * m


def _padded_vmem_bytes(shape, dtype):
    """(8,128)/(16,128)-tiling-aware VMEM footprint estimate of one block."""
    itemsize = jnp.dtype(dtype).itemsize
    sub_mult = 8 * (4 // itemsize) if itemsize < 4 else 8
    lead = 1
    for d in shape[:-2]:
        lead *= d
    return lead * _ceil_to(shape[-2], sub_mult) * _ceil_to(shape[-1], 128) * itemsize


def _choose_lane_pack(n, w, max_lanes=256):
    """Largest divisor of n whose packed lane width G*w fits one MXU pass
    (<= 256 lanes on v6e/v7x), preferring to leave >= 2 super images so the
    grid can be split across v7x's two TensorCores."""
    divs = [g for g in range(1, n + 1) if n % g == 0 and g * w <= max_lanes]
    if not divs:
        return 1
    with_two = [g for g in divs if n // g >= 2]
    return max(with_two) if with_two else max(divs)


def _choose_block_b(n_super, per_super_bytes, vmem_budget_bytes):
    """Super images per grid step: move >= ~1 MiB per step when possible
    (amortizes ~0.35 us per-step overhead) while double-buffered blocks stay
    inside the VMEM budget; prefer grid length >= 2 (v7x megacore)."""
    fits = [d for d in range(1, n_super + 1)
            if n_super % d == 0 and 2 * d * per_super_bytes <= vmem_budget_bytes]
    if not fits:
        return 1
    pref = [d for d in fits if n_super // d >= 2] or fits
    big_enough = [d for d in pref if d * per_super_bytes >= (1 << 20)]
    return min(big_enough) if big_enough else max(pref)


# ----------------------------------------------------------------------------
# Wrapper
# ----------------------------------------------------------------------------
@functools.partial(
    jax.jit,
    static_argnames=("pad", "compute_dtype", "lane_pack", "block_b", "vmem_budget_bytes"))
def random_shifts_aug(x, shift, pad, compute_dtype=jnp.bfloat16,
                      lane_pack=None, block_b=None, vmem_budget_bytes=24 * 2**20):
    """x: (n, c, h, w) float32 NCHW.  shift: (n, 2) float32, integer-valued in
    [0, 2*pad] (torch channel 0 -> x/width, channel 1 -> y/height).

    compute_dtype: matmul operand dtype.  bfloat16 (default) halves HBM traffic
    and VMEM footprint with f32 accumulation (~1e-2 abs error for unit-scale
    inputs); pass jnp.float32 for reference-accurate output.
    lane_pack / block_b / vmem_budget_bytes are tuning knobs; auto-sized by
    default (lane_pack*w <= 256, >=1 MiB per grid step, VMEM budget sized for
    v7x's tighter 64 MiB physical / 32 MiB scoped default).
    """
    n, c, h, w = x.shape
    assert h == w
    if lane_pack is None:
        lane_pack = _choose_lane_pack(n, w)
    G = lane_pack
    if n % G != 0:
        raise ValueError(f"lane_pack={G} must divide the batch size n={n}")
    n_super = n // G
    cdt = jnp.dtype(compute_dtype)

    # ---- glue: weights + layout plumbing (cheap XLA ops, no padded image) ---
    wy = _interp_weights(shift[:, 1], h, pad)                     # (n, h, h) f32
    wxt = _interp_weights(shift[:, 0], h, pad, transpose=True)    # (n, h, h) f32

    # Lane-pack G images per super image: last dim becomes G*w (lane-dense).
    xp = (x.reshape(n_super, G, c, h, w)
            .transpose(0, 2, 3, 1, 4)
            .reshape(n_super, c * h, G * w)
            .astype(cdt))
    wy_p = wy.reshape(n_super, G * h, h).astype(cdt)
    # Block-diagonal, pre-transposed x-stage weights: one dense matmul with
    # K = N = G*w replaces G per-image (c*h, w) @ (w, w) matmuls.
    bxt = jnp.einsum("bgij,gk->bgikj",
                     wxt.reshape(n_super, G, w, w),
                     jnp.eye(G, dtype=wxt.dtype)
                     ).reshape(n_super, G * w, G * w).astype(cdt)

    # ---- block sizing (lane-padding aware) ----------------------------------
    per_super = (_padded_vmem_bytes((c * h, G * w), cdt)
                 + _padded_vmem_bytes((G * h, h), cdt)
                 + _padded_vmem_bytes((G * w, G * w), cdt)
                 + _padded_vmem_bytes((h, G * c * w), x.dtype))
    if block_b is None:
        block_b = _choose_block_b(n_super, per_super, vmem_budget_bytes)
    if n_super % block_b != 0:
        raise ValueError(f"block_b={block_b} must divide n//lane_pack={n_super}")
    grid = (n_super // block_b,)
    step_bytes = block_b * per_super

    kernel = functools.partial(_rand_shift_kernel, c=c, h=h, w=w, g_pack=G)

    itm_in = cdt.itemsize
    itm_out = jnp.dtype(x.dtype).itemsize
    flops = 2 * n_super * (c * h) * (G * w) ** 2 + 2 * n * h * h * (c * w)
    bytes_accessed = (n_super * c * h * G * w * itm_in
                      + n_super * G * h * h * itm_in
                      + n_super * (G * w) * (G * w) * itm_in
                      + n_super * h * G * c * w * itm_out)

    out = pl.pallas_call(
        kernel,
        out_shape=jax.ShapeDtypeStruct((n_super, h, G * c * w), x.dtype),
        grid_spec=pltpu.PrefetchScalarGridSpec(
            num_scalar_prefetch=0,
            grid=grid,
            in_specs=[
                pl.BlockSpec((block_b, c * h, G * w), lambda i: (i, 0, 0)),
                pl.BlockSpec((block_b, G * h, h), lambda i: (i, 0, 0)),
                pl.BlockSpec((block_b, G * w, G * w), lambda i: (i, 0, 0)),
            ],
            out_specs=pl.BlockSpec((block_b, h, G * c * w), lambda i: (i, 0, 0)),
        ),
        compiler_params=pltpu.CompilerParams(
            dimension_semantics=("parallel",),
            vmem_limit_bytes=int(min(48 * 2**20, max(16 * 2**20, 3 * step_bytes))),
        ),
        cost_estimate=pl.CostEstimate(
            flops=flops, transcendentals=0, bytes_accessed=bytes_accessed),
    )(xp, wy_p, bxt)

    # Un-pack the lane-dense output slab back to NCHW (layout plumbing).
    return (out.reshape(n_super, h, G, c, w)
               .transpose(0, 2, 3, 1, 4)
               .reshape(n, c, h, w))


# ----------------------------------------------------------------------------
# Pure-JAX reference: the ORIGINAL padded-image formulation (independent of the
# pad-folding used by the kernel), with explicit HIGHEST matmul precision.
# ----------------------------------------------------------------------------
def _interp_weights_padded(shift_px, h, pad):
    H = h + 2 * pad
    eps = 1.0 / H
    arange = jnp.linspace(-1.0 + eps, 1.0 - eps, H, dtype=jnp.float32)[:h]
    g = arange[None, :] + shift_px[:, None] * (2.0 / H)
    pix = (g + 1.0) * H / 2.0 - 0.5
    p0 = jnp.floor(pix)
    w1 = pix - p0
    w0 = 1.0 - w1
    p0i = p0.astype(jnp.int32)
    p1i = p0i + 1
    cols = jnp.arange(H, dtype=jnp.int32)[None, None, :]
    oh0 = (p0i[:, :, None] == cols).astype(jnp.float32)
    oh1 = (p1i[:, :, None] == cols).astype(jnp.float32)
    return w0[:, :, None] * oh0 + w1[:, :, None] * oh1               # (n, h, H)


def _reference(x, shift, pad):
    x_pad = jnp.pad(x, ((0, 0), (0, 0), (pad, pad), (pad, pad)), mode="edge")
    wx = _interp_weights_padded(shift[:, 0], x.shape[2], pad)
    wy = _interp_weights_padded(shift[:, 1], x.shape[2], pad)
    return jnp.einsum("nip,ncpq,njq->ncij", wy, x_pad, wx,
                      precision=jax.lax.Precision.HIGHEST)


if __name__ == "__main__":
    def run_case(key, n, c, h, pad, compute_dtype, tol):
        kx, ks = jax.random.split(key)
        x = jax.random.normal(kx, (n, c, h, h), dtype=jnp.float32)
        # torch.randint(0, 2*pad+1, (n,1,1,2)) -> integer-valued float shifts.
        # Include the extremes 0 and 2*pad to exercise the folded replicate edges.
        shift_edges = jnp.array([[0.0, 2.0 * pad], [2.0 * pad, 0.0]], dtype=jnp.float32)
        shift_rand = jax.random.randint(ks, (n - 2, 2), 0, 2 * pad + 1).astype(jnp.float32)
        shift = jnp.concatenate([shift_edges, shift_rand], axis=0)

        out = jax.block_until_ready(
            random_shifts_aug(x, shift, pad=pad, compute_dtype=compute_dtype))
        ref = _reference(x, shift, pad)
        assert out.shape == (n, c, h, h)
        err = float(jnp.max(jnp.abs(out - ref)))
        assert err < tol, (
            f"kernel mismatch (n={n}, c={c}, h={h}, pad={pad}, "
            f"compute_dtype={compute_dtype}): max abs err {err}")

    key = jax.random.PRNGKey(0)
    k1, k2, k3 = jax.random.split(key, 3)
    # Exact path: f32 operands (full-precision MXU path inside Mosaic).
    run_case(k1, 16, 4, 16, 4, jnp.float32, 1e-4)
    # Perf path: bf16 operands, f32 accumulation (halved HBM traffic).
    run_case(k2, 16, 4, 16, 4, jnp.bfloat16, 6e-2)
    # Small / odd configuration (different pad, lane pack, channel count).
    run_case(k3, 4, 2, 8, 1, jnp.float32, 1e-4)
    print("KERNEL_OK")
</pallas_src>

<mosaic_0001>
module attributes {stable_mosaic.version = 11 : i64} {
  func.func @_rand_shift_kernel(%arg0: i32, %arg1: memref<1x64x128xf32, #tpu.memory_space<vmem>>, %arg2: memref<1x128x16xf32, #tpu.memory_space<vmem>>, %arg3: memref<1x128x128xf32, #tpu.memory_space<vmem>>, %arg4: memref<1x16x512xf32, #tpu.memory_space<vmem>>) attributes {dimension_semantics = [#tpu.dimension_semantics<parallel>], iteration_bounds = array<i64: 2>, scalar_prefetch = 0 : i64, scratch_operands = 0 : i64, tpu.core_type = #tpu.core_type<tc>, window_params = [{transform_indices = @transform_0, window_bounds = array<i64: 1, 64, 128>}, {transform_indices = @transform_1, window_bounds = array<i64: 1, 128, 16>}, {transform_indices = @transform_2, window_bounds = array<i64: 1, 128, 128>}, {transform_indices = @transform_3, window_bounds = array<i64: 1, 16, 512>}]} {
    %c0_i32 = arith.constant 0 : i32
    %0 = arith.index_cast %c0_i32 : i32 to index
    %c0 = arith.constant 0 : index
    %c0_0 = arith.constant 0 : index
    %1 = vector.load %arg1[%0, %c0, %c0_0] : memref<1x64x128xf32, #tpu.memory_space<vmem>>, vector<1x64x128xf32>
    %2 = vector.shape_cast %1 : vector<1x64x128xf32> to vector<64x128xf32>
    %3 = arith.index_cast %c0_i32 : i32 to index
    %c0_1 = arith.constant 0 : index
    %c0_2 = arith.constant 0 : index
    %4 = vector.load %arg3[%3, %c0_1, %c0_2] : memref<1x128x128xf32, #tpu.memory_space<vmem>>, vector<1x128x128xf32>
    %5 = vector.shape_cast %4 : vector<1x128x128xf32> to vector<128x128xf32>
    %6 = arith.index_cast %c0_i32 : i32 to index
    %c0_3 = arith.constant 0 : index
    %c0_4 = arith.constant 0 : index
    %7 = vector.load %arg2[%6, %c0_3, %c0_4] : memref<1x128x16xf32, #tpu.memory_space<vmem>>, vector<1x128x16xf32>
    %8 = vector.shape_cast %7 : vector<1x128x16xf32> to vector<128x16xf32>
    %cst = arith.constant dense<0.000000e+00> : vector<64x128xf32>
    %9 = tpu.matmul %2, %5, %cst {dimension_numbers = #tpu.dot_dimension_numbers<[1], [0], [0], [1], [0, 0, 1, 1], [], []>} : vector<64x128xf32>, vector<128x128xf32>, vector<64x128xf32> -> vector<64x128xf32>
    %10 = vector.extract_strided_slice %9 {offsets = [0, 0], sizes = [64, 16], strides = [1, 1]} : vector<64x128xf32> to vector<64x16xf32>
    %11 = vector.extract_strided_slice %10 {offsets = [0, 0], sizes = [16, 16], strides = [1, 1]} : vector<64x16xf32> to vector<16x16xf32>
    %12 = vector.extract_strided_slice %10 {offsets = [16, 0], sizes = [16, 16], strides = [1, 1]} : vector<64x16xf32> to vector<16x16xf32>
    %13 = vector.extract_strided_slice %10 {offsets = [32, 0], sizes = [16, 16], strides = [1, 1]} : vector<64x16xf32> to vector<16x16xf32>
    %14 = vector.extract_strided_slice %10 {offsets = [48, 0], sizes = [16, 16], strides = [1, 1]} : vector<64x16xf32> to vector<16x16xf32>
    %15 = tpu.concatenate %11, %12, %13, %14 in 1 : vector<16x16xf32>, vector<16x16xf32>, vector<16x16xf32>, vector<16x16xf32> -> vector<16x64xf32>
    %16 = vector.extract_strided_slice %8 {offsets = [0, 0], sizes = [16, 16], strides = [1, 1]} : vector<128x16xf32> to vector<16x16xf32>
    %cst_5 = arith.constant dense<0.000000e+00> : vector<16x64xf32>
    %17 = tpu.matmul %16, %15, %cst_5 {dimension_numbers = #tpu.dot_dimension_numbers<[1], [0], [0], [1], [0, 0, 1, 1], [], []>} : vector<16x16xf32>, vector<16x64xf32>, vector<16x64xf32> -> vector<16x64xf32>
    %18 = vector.extract_strided_slice %9 {offsets = [0, 16], sizes = [64, 16], strides = [1, 1]} : vector<64x128xf32> to vector<64x16xf32>
    %19 = vector.extract_strided_slice %18 {offsets = [0, 0], sizes = [16, 16], strides = [1, 1]} : vector<64x16xf32> to vector<16x16xf32>
    %20 = vector.extract_strided_slice %18 {offsets = [16, 0], sizes = [16, 16], strides = [1, 1]} : vector<64x16xf32> to vector<16x16xf32>
    %21 = vector.extract_strided_slice %18 {offsets = [32, 0], sizes = [16, 16], strides = [1, 1]} : vector<64x16xf32> to vector<16x16xf32>
    %22 = vector.extract_strided_slice %18 {offsets = [48, 0], sizes = [16, 16], strides = [1, 1]} : vector<64x16xf32> to vector<16x16xf32>
    %23 = tpu.concatenate %19, %20, %21, %22 in 1 : vector<16x16xf32>, vector<16x16xf32>, vector<16x16xf32>, vector<16x16xf32> -> vector<16x64xf32>
    %24 = vector.extract_strided_slice %8 {offsets = [16, 0], sizes = [16, 16], strides = [1, 1]} : vector<128x16xf32> to vector<16x16xf32>
    %cst_6 = arith.constant dense<0.000000e+00> : vector<16x64xf32>
    %25 = tpu.matmul %24, %23, %cst_6 {dimension_numbers = #tpu.dot_dimension_numbers<[1], [0], [0], [1], [0, 0, 1, 1], [], []>} : vector<16x16xf32>, vector<16x64xf32>, vector<16x64xf32> -> vector<16x64xf32>
    %26 = vector.extract_strided_slice %9 {offsets = [0, 32], sizes = [64, 16], strides = [1, 1]} : vector<64x128xf32> to vector<64x16xf32>
    %27 = vector.extract_strided_slice %26 {offsets = [0, 0], sizes = [16, 16], strides = [1, 1]} : vector<64x16xf32> to vector<16x16xf32>
    %28 = vector.extract_strided_slice %26 {offsets = [16, 0], sizes = [16, 16], strides = [1, 1]} : vector<64x16xf32> to vector<16x16xf32>
    %29 = vector.extract_strided_slice %26 {offsets = [32, 0], sizes = [16, 16], strides = [1, 1]} : vector<64x16xf32> to vector<16x16xf32>
    %30 = vector.extract_strided_slice %26 {offsets = [48, 0], sizes = [16, 16], strides = [1, 1]} : vector<64x16xf32> to vector<16x16xf32>
    %31 = tpu.concatenate %27, %28, %29, %30 in 1 : vector<16x16xf32>, vector<16x16xf32>, vector<16x16xf32>, vector<16x16xf32> -> vector<16x64xf32>
    %32 = vector.extract_strided_slice %8 {offsets = [32, 0], sizes = [16, 16], strides = [1, 1]} : vector<128x16xf32> to vector<16x16xf32>
    %cst_7 = arith.constant dense<0.000000e+00> : vector<16x64xf32>
    %33 = tpu.matmul %32, %31, %cst_7 {dimension_numbers = #tpu.dot_dimension_numbers<[1], [0], [0], [1], [0, 0, 1, 1], [], []>} : vector<16x16xf32>, vector<16x64xf32>, vector<16x64xf32> -> vector<16x64xf32>
    %34 = vector.extract_strided_slice %9 {offsets = [0, 48], sizes = [64, 16], strides = [1, 1]} : vector<64x128xf32> to vector<64x16xf32>
    %35 = vector.extract_strided_slice %34 {offsets = [0, 0], sizes = [16, 16], strides = [1, 1]} : vector<64x16xf32> to vector<16x16xf32>
    %36 = vector.extract_strided_slice %34 {offsets = [16, 0], sizes = [16, 16], strides = [1, 1]} : vector<64x16xf32> to vector<16x16xf32>
    %37 = vector.extract_strided_slice %34 {offsets = [32, 0], sizes = [16, 16], strides = [1, 1]} : vector<64x16xf32> to vector<16x16xf32>
    %38 = vector.extract_strided_slice %34 {offsets = [48, 0], sizes = [16, 16], strides = [1, 1]} : vector<64x16xf32> to vector<16x16xf32>
    %39 = tpu.concatenate %35, %36, %37, %38 in 1 : vector<16x16xf32>, vector<16x16xf32>, vector<16x16xf32>, vector<16x16xf32> -> vector<16x64xf32>
    %40 = vector.extract_strided_slice %8 {offsets = [48, 0], sizes = [16, 16], strides = [1, 1]} : vector<128x16xf32> to vector<16x16xf32>
    %cst_8 = arith.constant dense<0.000000e+00> : vector<16x64xf32>
    %41 = tpu.matmul %40, %39, %cst_8 {dimension_numbers = #tpu.dot_dimension_numbers<[1], [0], [0], [1], [0, 0, 1, 1], [], []>} : vector<16x16xf32>, vector<16x64xf32>, vector<16x64xf32> -> vector<16x64xf32>
    %42 = vector.extract_strided_slice %9 {offsets = [0, 64], sizes = [64, 16], strides = [1, 1]} : vector<64x128xf32> to vector<64x16xf32>
    %43 = vector.extract_strided_slice %42 {offsets = [0, 0], sizes = [16, 16], strides = [1, 1]} : vector<64x16xf32> to vector<16x16xf32>
    %44 = vector.extract_strided_slice %42 {offsets = [16, 0], sizes = [16, 16], strides = [1, 1]} : vector<64x16xf32> to vector<16x16xf32>
    %45 = vector.extract_strided_slice %42 {offsets = [32, 0], sizes = [16, 16], strides = [1, 1]} : vector<64x16xf32> to vector<16x16xf32>
    %46 = vector.extract_strided_slice %42 {offsets = [48, 0], sizes = [16, 16], strides = [1, 1]} : vector<64x16xf32> to vector<16x16xf32>
    %47 = tpu.concatenate %43, %44, %45, %46 in 1 : vector<16x16xf32>, vector<16x16xf32>, vector<16x16xf32>, vector<16x16xf32> -> vector<16x64xf32>
    %48 = vector.extract_strided_slice %8 {offsets = [64, 0], sizes = [16, 16], strides = [1, 1]} : vector<128x16xf32> to vector<16x16xf32>
    %cst_9 = arith.constant dense<0.000000e+00> : vector<16x64xf32>
    %49 = tpu.matmul %48, %47, %cst_9 {dimension_numbers = #tpu.dot_dimension_numbers<[1], [0], [0], [1], [0, 0, 1, 1], [], []>} : vector<16x16xf32>, vector<16x64xf32>, vector<16x64xf32> -> vector<16x64xf32>
    %50 = vector.extract_strided_slice %9 {offsets = [0, 80], sizes = [64, 16], strides = [1, 1]} : vector<64x128xf32> to vector<64x16xf32>
    %51 = vector.extract_strided_slice %50 {offsets = [0, 0], sizes = [16, 16], strides = [1, 1]} : vector<64x16xf32> to vector<16x16xf32>
    %52 = vector.extract_strided_slice %50 {offsets = [16, 0], sizes = [16, 16], strides = [1, 1]} : vector<64x16xf32> to vector<16x16xf32>
    %53 = vector.extract_strided_slice %50 {offsets = [32, 0], sizes = [16, 16], strides = [1, 1]} : vector<64x16xf32> to vector<16x16xf32>
    %54 = vector.extract_strided_slice %50 {offsets = [48, 0], sizes = [16, 16], strides = [1, 1]} : vector<64x16xf32> to vector<16x16xf32>
    %55 = tpu.concatenate %51, %52, %53, %54 in 1 : vector<16x16xf32>, vector<16x16xf32>, vector<16x16xf32>, vector<16x16xf32> -> vector<16x64xf32>
    %56 = vector.extract_strided_slice %8 {offsets = [80, 0], sizes = [16, 16], strides = [1, 1]} : vector<128x16xf32> to vector<16x16xf32>
    %cst_10 = arith.constant dense<0.000000e+00> : vector<16x64xf32>
    %57 = tpu.matmul %56, %55, %cst_10 {dimension_numbers = #tpu.dot_dimension_numbers<[1], [0], [0], [1], [0, 0, 1, 1], [], []>} : vector<16x16xf32>, vector<16x64xf32>, vector<16x64xf32> -> vector<16x64xf32>
    %58 = vector.extract_strided_slice %9 {offsets = [0, 96], sizes = [64, 16], strides = [1, 1]} : vector<64x128xf32> to vector<64x16xf32>
    %59 = vector.extract_strided_slice %58 {offsets = [0, 0], sizes = [16, 16], strides = [1, 1]} : vector<64x16xf32> to vector<16x16xf32>
    %60 = vector.extract_strided_slice %58 {offsets = [16, 0], sizes = [16, 16], strides = [1, 1]} : vector<64x16xf32> to vector<16x16xf32>
    %61 = vector.extract_strided_slice %58 {offsets = [32, 0], sizes = [16, 16], strides = [1, 1]} : vector<64x16xf32> to vector<16x16xf32>
    %62 = vector.extract_strided_slice %58 {offsets = [48, 0], sizes = [16, 16], strides = [1, 1]} : vector<64x16xf32> to vector<16x16xf32>
    %63 = tpu.concatenate %59, %60, %61, %62 in 1 : vector<16x16xf32>, vector<16x16xf32>, vector<16x16xf32>, vector<16x16xf32> -> vector<16x64xf32>
    %64 = vector.extract_strided_slice %8 {offsets = [96, 0], sizes = [16, 16], strides = [1, 1]} : vector<128x16xf32> to vector<16x16xf32>
    %cst_11 = arith.constant dense<0.000000e+00> : vector<16x64xf32>
    %65 = tpu.matmul %64, %63, %cst_11 {dimension_numbers = #tpu.dot_dimension_numbers<[1], [0], [0], [1], [0, 0, 1, 1], [], []>} : vector<16x16xf32>, vector<16x64xf32>, vector<16x64xf32> -> vector<16x64xf32>
    %66 = vector.extract_strided_slice %9 {offsets = [0, 112], sizes = [64, 16], strides = [1, 1]} : vector<64x128xf32> to vector<64x16xf32>
    %67 = vector.extract_strided_slice %66 {offsets = [0, 0], sizes = [16, 16], strides = [1, 1]} : vector<64x16xf32> to vector<16x16xf32>
    %68 = vector.extract_strided_slice %66 {offsets = [16, 0], sizes = [16, 16], strides = [1, 1]} : vector<64x16xf32> to vector<16x16xf32>
    %69 = vector.extract_strided_slice %66 {offsets = [32, 0], sizes = [16, 16], strides = [1, 1]} : vector<64x16xf32> to vector<16x16xf32>
    %70 = vector.extract_strided_slice %66 {offsets = [48, 0], sizes = [16, 16], strides = [1, 1]} : vector<64x16xf32> to vector<16x16xf32>
    %71 = tpu.concatenate %67, %68, %69, %70 in 1 : vector<16x16xf32>, vector<16x16xf32>, vector<16x16xf32>, vector<16x16xf32> -> vector<16x64xf32>
    %72 = vector.extract_strided_slice %8 {offsets = [112, 0], sizes = [16, 16], strides = [1, 1]} : vector<128x16xf32> to vector<16x16xf32>
    %cst_12 = arith.constant dense<0.000000e+00> : vector<16x64xf32>
    %73 = tpu.matmul %72, %71, %cst_12 {dimension_numbers = #tpu.dot_dimension_numbers<[1], [0], [0], [1], [0, 0, 1, 1], [], []>} : vector<16x16xf32>, vector<16x64xf32>, vector<16x64xf32> -> vector<16x64xf32>
    %74 = tpu.concatenate %17, %25, %33, %41, %49, %57, %65, %73 in 1 : vector<16x64xf32>, vector<16x64xf32>, vector<16x64xf32>, vector<16x64xf32>, vector<16x64xf32>, vector<16x64xf32>, vector<16x64xf32>, vector<16x64xf32> -> vector<16x512xf32>
    %75 = arith.index_cast %c0_i32 : i32 to index
    %c0_13 = arith.constant 0 : index
    %c0_14 = arith.constant 0 : index
    %76 = vector.load %arg4[%75, %c0_13, %c0_14] : memref<1x16x512xf32, #tpu.memory_space<vmem>>, vector<1x16x512xf32>
    %77 = vector.shape_cast %76 : vector<1x16x512xf32> to vector<16x512xf32>
    %78 = vector.shape_cast %74 : vector<16x512xf32> to vector<1x16x512xf32>
    tpu.vector_store %arg4[%75, %c0_13, %c0_14], %78 {strides = array<i32>} : memref<1x16x512xf32, #tpu.memory_space<vmem>>, vector<1x16x512xf32>,
    %c1_i32 = arith.constant 1 : i32
    return
  }
  func.func @transform_0(%arg0: i32) -> (i32, i32, i32) {
    %c0_i32 = arith.constant 0 : i32
    %c0_i32_0 = arith.constant 0 : i32
    %c0_i32_1 = arith.constant 0 : i32
    return %arg0, %c0_i32, %c0_i32_0 : i32, i32, i32
  }
  func.func @transform_1(%arg0: i32) -> (i32, i32, i32) {
    %c0_i32 = arith.constant 0 : i32
    %c0_i32_0 = arith.constant 0 : i32
    %c0_i32_1 = arith.constant 0 : i32
    return %arg0, %c0_i32, %c0_i32_0 : i32, i32, i32
  }
  func.func @transform_2(%arg0: i32) -> (i32, i32, i32) {
    %c0_i32 = arith.constant 0 : i32
    %c0_i32_0 = arith.constant 0 : i32
    %c0_i32_1 = arith.constant 0 : i32
    return %arg0, %c0_i32, %c0_i32_0 : i32, i32, i32
  }
  func.func @transform_3(%arg0: i32) -> (i32, i32, i32) {
    %c0_i32 = arith.constant 0 : i32
    %c0_i32_0 = arith.constant 0 : i32
    %c0_i32_1 = arith.constant 0 : i32
    return %arg0, %c0_i32, %c0_i32_0 : i32, i32, i32
  }
}

</mosaic_0001>

<llo_original>
// kernel: random_shifts_aug.1
$region0: #{random_shifts_aug.1}
  #allocation0 [shape = 'u32[]', space=smem, size = 0x4, offset = 0x4, fixed_abs, tag = 'smem constant byte address 0x4 - core index']
  #allocation1 [shape = 'u32[144,128]{1,0:T(1,128)}', space=vmem, size = 0x12000, scoped, tag = 'internal scratch']
  %s0 = inlined_call_operand.vmem [shape: f32[2,64,128], index: 0, kind: input, shape index: {}]
  %s1 = inlined_call_operand.vmem [shape: f32[2,128,16], index: 1, kind: input, shape index: {}]
  %s2 = inlined_call_operand.vmem [shape: f32[2,128,128], index: 2, kind: input, shape index: {}]
  %s3 = inlined_call_operand.vmem [shape: f32[2,16,512], index: 3, kind: output, shape index: {}]
  %s4 = sld [smem:[#allocation0]]
  $region45: #{random_shifts_aug.1} parent=0
    _
  %s6 = ssub.s32 1, %s4
  %s7 = scalar_select 0, %s6, %s4
  loop: start=0, step=1, limit=4
  $region2: #{random_shifts_aug.1} parent=0 // loop_pre_header
    _
  $region3: #{random_shifts_aug.1} parent=0 // loop_header
    %s9 = sphi 0, %s13
    %p10 = scmp.ge.s32.totalorder %s9, 4
    %s19 = sphi 0, %s21
    %s22 = sphi 0, %s19
    %s23 = sphi 0, %s22
    %s39 = sphi 0, %s23
    %s45 = sphi 0, %s47
    %s48 = sphi 0, %s45
    %s49 = sphi 0, %s48
    %s65 = sphi 0, %s49
    %s71 = sphi 0, %s73
    %s74 = sphi 0, %s71
    %s75 = sphi 0, %s74
    %s91 = sphi 0, %s75
    %s97 = sphi 0, %s99
    %s100 = sphi 0, %s97
    %s101 = sphi 0, %s100
    %s117 = sphi 0, %s101
  $region4: #{random_shifts_aug.1} parent=0 // loop_header_branch
    %12 = sbr.rel (%p10) target = $region8
  $region5: #{random_shifts_aug.1} parent=0 // loop_body
    %s14 = ssub.s32 %s9, 1
    %s15 = ssub.s32 %s9, 2
    %s16 = sadd.s32 %s9, 1
    %s17 = ssub.s32 %s9, %s16
    %p18 = scmp.eq.s32.totalorder %s17, 0
    %s20 = sadd.s32 %s19, 1
    %s21 = scalar_select %p18, %s19, %s20
    %p24 = pneg %p18
    %p25 = scmp.eq.s32.totalorder %s9, 1
    %p26 = por %p24, %p25
    %p27 = scmp.ne.s32.totalorder %s19, %s22
    %p28 = scmp.eq.s32.totalorder %s9, 0
    %p29 = por %p27, %p28
    %p30 = scmp.ne.s32.totalorder %s19, %s22
    %p31 = scmp.eq.s32.totalorder %s14, 1
    %p32 = por %p30, %p31
    %p33 = scmp.ne.s32.totalorder %s22, %s23
    %p34 = scmp.eq.s32.totalorder %s14, 0
    %p35 = por %p33, %p34
    %p36 = scmp.ne.s32.totalorder %s22, %s23
    %p37 = scmp.eq.s32.totalorder %s15, 1
    %p38 = por %p36, %p37
    %p40 = scmp.ne.s32.totalorder %s23, %s39
    %p41 = scmp.eq.s32.totalorder %s15, 0
    %p42 = por %p40, %p41
    %s43 = ssub.s32 %s9, %s16
    %p44 = scmp.eq.s32.totalorder %s43, 0
    %s46 = sadd.s32 %s45, 1
    %s47 = scalar_select %p44, %s45, %s46
    %p50 = pneg %p44
    %p51 = scmp.eq.s32.totalorder %s9, 1
    %p52 = por %p50, %p51
    %p53 = scmp.ne.s32.totalorder %s45, %s48
    %p54 = scmp.eq.s32.totalorder %s9, 0
    %p55 = por %p53, %p54
    %p56 = scmp.ne.s32.totalorder %s45, %s48
    %p57 = scmp.eq.s32.totalorder %s14, 1
    %p58 = por %p56, %p57
    %p59 = scmp.ne.s32.totalorder %s48, %s49
    %p60 = scmp.eq.s32.totalorder %s14, 0
    %p61 = por %p59, %p60
    %p62 = scmp.ne.s32.totalorder %s48, %s49
    %p63 = scmp.eq.s32.totalorder %s15, 1
    %p64 = por %p62, %p63
    %p66 = scmp.ne.s32.totalorder %s49, %s65
    %p67 = scmp.eq.s32.totalorder %s15, 0
    %p68 = por %p66, %p67
    %s69 = ssub.s32 %s9, %s16
    %p70 = scmp.eq.s32.totalorder %s69, 0
    %s72 = sadd.s32 %s71, 1
    %s73 = scalar_select %p70, %s71, %s72
    %p76 = pneg %p70
    %p77 = scmp.eq.s32.totalorder %s9, 1
    %p78 = por %p76, %p77
    %p79 = scmp.ne.s32.totalorder %s71, %s74
    %p80 = scmp.eq.s32.totalorder %s9, 0
    %p81 = por %p79, %p80
    %p82 = scmp.ne.s32.totalorder %s71, %s74
    %p83 = scmp.eq.s32.totalorder %s14, 1
    %p84 = por %p82, %p83
    %p85 = scmp.ne.s32.totalorder %s74, %s75
    %p86 = scmp.eq.s32.totalorder %s14, 0
    %p87 = por %p85, %p86
    %p88 = scmp.ne.s32.totalorder %s74, %s75
    %p89 = scmp.eq.s32.totalorder %s15, 1
    %p90 = por %p88, %p89
    %p92 = scmp.ne.s32.totalorder %s75, %s91
    %p93 = scmp.eq.s32.totalorder %s15, 0
    %p94 = por %p92, %p93
    %s95 = ssub.s32 %s9, %s16
    %p96 = scmp.eq.s32.totalorder %s95, 0
    %s98 = sadd.s32 %s97, 1
    %s99 = scalar_select %p96, %s97, %s98
    %p102 = pneg %p96
    %p103 = scmp.eq.s32.totalorder %s9, 1
    %p104 = por %p102, %p103
    %p105 = scmp.ne.s32.totalorder %s97, %s100
    %p106 = scmp.eq.s32.totalorder %s9, 0
    %p107 = por %p105, %p106
    %p108 = scmp.ne.s32.totalorder %s97, %s100
    %p109 = scmp.eq.s32.totalorder %s14, 1
    %p110 = por %p108, %p109
    %p111 = scmp.ne.s32.totalorder %s100, %s101
    %p112 = scmp.eq.s32.totalorder %s14, 0
    %p113 = por %p111, %p112
    %p114 = scmp.ne.s32.totalorder %s100, %s101
    %p115 = scmp.eq.s32.totalorder %s15, 1
    %p116 = por %p114, %p115
    %p118 = scmp.ne.s32.totalorder %s101, %s117
    %p119 = scmp.eq.s32.totalorder %s15, 0
    %p120 = por %p118, %p119
    %p121 = scmp.le.s32.totalorder 1, %s9
    %p122 = scmp.lt.s32.totalorder %s9, 3
    %p123 = pnand %p121, %p122
    %p124 = pneg %p123
    // Predicated region
    $region9: #{random_shifts_aug.1} parent=5 // pred_check
      _
    $region10: #{random_shifts_aug.1} parent=5 // pred_check_branch
      %126 = sbr.rel (%p123) target = $region12
    $region11: #{random_shifts_aug.1} parent=5 // pred_region
      %s127 = ssub.s32 %s9, 1
    $region12: #{random_shifts_aug.1} parent=5 // pred_fallthru
      _
    %p128 = scmp.lt.s32.totalorder %s9, 2
    // Predicated region
    $region13: #{random_shifts_aug.1} parent=5 // pred_check
      %p129 = pneg %p128
    $region14: #{random_shifts_aug.1} parent=5 // pred_check_branch
      %131 = sbr.rel (%p129) target = $region16
    $region15: #{random_shifts_aug.1} parent=5 // pred_region
      // Predicated region
      $region17: #{random_shifts_aug.1} parent=15 // pred_check
        %p132 = pneg %p29
      $region18: #{random_shifts_aug.1} parent=15 // pred_check_branch
        %134 = sbr.rel (%p132) target = $region20
      $region19: #{random_shifts_aug.1} parent=15 // pred_region
        %p135 = scmp.lt.s32.totalorder %s9, 1
        %s136 = scalar_select %p135, %s9, 1
        %s137 = smul.addr %s136, 8
        %s138 = smul.addr %s137, 8
        %s139 = scalar_lea.vmem %s0, %s138
      $region20: #{random_shifts_aug.1} parent=15 // pred_fallthru
        _
      // Predicated region
      $region21: #{random_shifts_aug.1} parent=15 // pred_check
        %p140 = pneg %p55
      $region22: #{random_shifts_aug.1} parent=15 // pred_check_branch
        %142 = sbr.rel (%p140) target = $region24
      $region23: #{random_shifts_aug.1} parent=15 // pred_region
        %p143 = scmp.lt.s32.totalorder %s9, 1
        %s144 = scalar_select %p143, %s9, 1
        %s145 = smul.addr %s144, 16
        %s146 = smul.addr %s145, 8
        %s147 = scalar_lea.vmem %s1, %s146
      $region24: #{random_shifts_aug.1} parent=15 // pred_fallthru
        _
      // Predicated region
      $region25: #{random_shifts_aug.1} parent=15 // pred_check
        %p148 = pneg %p81
      $region26: #{random_shifts_aug.1} parent=15 // pred_check_branch
        %150 = sbr.rel (%p148) target = $region28
      $region27: #{random_shifts_aug.1} parent=15 // pred_region
        %p151 = scmp.lt.s32.totalorder %s9, 1
        %s152 = scalar_select %p151, %s9, 1
        %s153 = smul.addr %s152, 16
        %s154 = smul.addr %s153, 8
        %s155 = scalar_lea.vmem %s2, %s154
      $region28: #{random_shifts_aug.1} parent=15 // pred_fallthru
        _
    $region16: #{random_shifts_aug.1} parent=5 // pred_fallthru
      _
    %p156 = scmp.le.s32.totalorder 1, %s9
    %p157 = scmp.lt.s32.totalorder %s9, 3
    %p158 = pnand %p156, %p157
    %p159 = pneg %p158
    // Predicated region
    $region29: #{random_shifts_aug.1} parent=5 // pred_check
      _
    $region30: #{random_shifts_aug.1} parent=5 // pred_check_branch
      %161 = sbr.rel (%p158) target = $region32
    $region31: #{random_shifts_aug.1} parent=5 // pred_region
      %s162 = ssub.s32 %s9, 1
      %p163 = scmp.lt.s32.totalorder %s14, 1
      %s164 = scalar_select %p163, %s14, 1
      %s165 = smul.addr %s164, 8
      %s166 = smul.addr %s165, 8
      %s167 = scalar_lea.vmem %s0, %s166
      %p168 = pneg %p35
      %p169 = pneg %p32
      %p170 = scmp.lt.s32.totalorder %s14, 1
      %s171 = scalar_select %p170, %s14, 1
      %s172 = smul.addr %s171, 16
      %s173 = smul.addr %s172, 8
      %s174 = scalar_lea.vmem %s1, %s173
      %p175 = pneg %p61
      %p176 = pneg %p58
      %p177 = scmp.lt.s32.totalorder %s14, 1
      %s178 = scalar_select %p177, %s14, 1
      %s179 = smul.addr %s178, 16
      %s180 = smul.addr %s179, 8
      %s181 = scalar_lea.vmem %s2, %s180
      %p182 = pneg %p87
      %p183 = pneg %p84
      %p184 = pneg %p113
      %p185 = pneg %p110
      %p186 = scmp.lt.s32.totalorder %s14, 1
      %s187 = scalar_select %p186, %s14, 1
      %s188 = smul.addr %s187, 8
      %s189 = smul.addr %s188, 8
      %s190 = scalar_lea.vmem %s3, %s189
      %p191 = scmp.lt.s32.totalorder %s14, 1
      %s192 = scalar_select %p191, %s14, 1
      %s193 = smul.addr %s192, 8
      %s194 = smul.addr %s193, 8
      %s195 = scalar_lea.vmem %s0, %s194
      %p196 = scmp.lt.s32.totalorder %s14, 1
      %s197 = scalar_select %p196, %s14, 1
      %s198 = smul.addr %s197, 16
      %s199 = smul.addr %s198, 8
      %s200 = scalar_lea.vmem %s1, %s199
      %p201 = scmp.lt.s32.totalorder %s14, 1
      %s202 = scalar_select %p201, %s14, 1
      %s203 = smul.addr %s202, 16
      %s204 = smul.addr %s203, 8
      %s205 = scalar_lea.vmem %s2, %s204
      %p206 = scmp.lt.s32.totalorder %s14, 1
      %s207 = scalar_select %p206, %s14, 1
      %s208 = smul.addr %s207, 8
      %s209 = smul.addr %s208, 8
      %s210 = scalar_lea.vmem %s3, %s209
      %v211 = vld [vmem:[%s195] sm:$0xff]
      %v212 = vld [vmem:[%s195 + $0x8] sm:$0xff]
      %v213 = vld [vmem:[%s195 + $0x10] sm:$0xff]
      %v214 = vld [vmem:[%s195 + $0x18] sm:$0xff]
      %v215 = vld [vmem:[%s195 + $0x20] sm:$0xff]
      %v216 = vld [vmem:[%s195 + $0x28] sm:$0xff]
      %v217 = vld [vmem:[%s195 + $0x30] sm:$0xff]
      %v218 = vld [vmem:[%s195 + $0x38] sm:$0xff]
      %v219 = vld [vmem:[%s205] sm:$0xff]
      %v220 = vld [vmem:[%s205 + $0x8] sm:$0xff]
      %v221 = vld [vmem:[%s205 + $0x10] sm:$0xff]
      %v222 = vld [vmem:[%s205 + $0x18] sm:$0xff]
      %v223 = vld [vmem:[%s205 + $0x20] sm:$0xff]
      %v224 = vld [vmem:[%s205 + $0x28] sm:$0xff]
      %v225 = vld [vmem:[%s205 + $0x30] sm:$0xff]
      %v226 = vld [vmem:[%s205 + $0x38] sm:$0xff]
      %v227 = vld [vmem:[%s205 + $0x40] sm:$0xff]
      %v228 = vld [vmem:[%s205 + $0x48] sm:$0xff]
      %v229 = vld [vmem:[%s205 + $0x50] sm:$0xff]
      %v230 = vld [vmem:[%s205 + $0x58] sm:$0xff]
      %v231 = vld [vmem:[%s205 + $0x60] sm:$0xff]
      %v232 = vld [vmem:[%s205 + $0x68] sm:$0xff]
      %v233 = vld [vmem:[%s205 + $0x70] sm:$0xff]
      %v234 = vld [vmem:[%s205 + $0x78] sm:$0xff]
      %v235 = vld [vmem:[%s200] sm:$0xff]
      %v236 = vld [vmem:[%s200 + $0x8] sm:$0xff]
      %v237 = vld [vmem:[%s200 + $0x10] sm:$0xff]
      %v238 = vld [vmem:[%s200 + $0x18] sm:$0xff]
      %v239 = vld [vmem:[%s200 + $0x20] sm:$0xff]
      %v240 = vld [vmem:[%s200 + $0x28] sm:$0xff]
      %v241 = vld [vmem:[%s200 + $0x30] sm:$0xff]
      %v242 = vld [vmem:[%s200 + $0x38] sm:$0xff]
      %v243 = vld [vmem:[%s200 + $0x40] sm:$0xff]
      %v244 = vld [vmem:[%s200 + $0x48] sm:$0xff]
      %v245 = vld [vmem:[%s200 + $0x50] sm:$0xff]
      %v246 = vld [vmem:[%s200 + $0x58] sm:$0xff]
      %v247 = vld [vmem:[%s200 + $0x60] sm:$0xff]
      %v248 = vld [vmem:[%s200 + $0x68] sm:$0xff]
      %v249 = vld [vmem:[%s200 + $0x70] sm:$0xff]
      %v250 = vld [vmem:[%s200 + $0x78] sm:$0xff]
      %251 = vmatprep.subr.mxu0 0.0
      %252 = vmatpush1.msra.mxu0 %v219
      %253 = vmatprep.subr.mxu0 0.0
      %254 = vmatpush1.msra.mxu0 %v220
      %255 = vmatprep.subr.mxu0 0.0
      %256 = vmatpush1.msra.mxu0 %v221
      %257 = vmatprep.subr.mxu0 0.0
      %258 = vmatpush1.msra.mxu0 %v222
      %259 = vmatprep.subr.mxu0 0.0
      %260 = vmatpush1.msra.mxu0 %v223
      %261 = vmatprep.subr.mxu0 0.0
      %262 = vmatpush1.msra.mxu0 %v224
      %263 = vmatprep.subr.mxu0 0.0
      %264 = vmatpush1.msra.mxu0 %v225
      %265 = vmatprep.subr.mxu0 0.0
      %266 = vmatpush1.msra.mxu0 %v226
      %267 = vmatprep.subr.mxu0 0.0
      %268 = vmatpush1.msra.mxu0 %v227
      %269 = vmatprep.subr.mxu0 0.0
      %270 = vmatpush1.msra.mxu0 %v228
      %271 = vmatprep.subr.mxu0 0.0
      %272 = vmatpush1.msra.mxu0 %v229
      %273 = vmatprep.subr.mxu0 0.0
      %274 = vmatpush1.msra.mxu0 %v230
      %275 = vmatprep.subr.mxu0 0.0
      %276 = vmatpush1.msra.mxu0 %v231
      %277 = vmatprep.subr.mxu0 0.0
      %278 = vmatpush1.msra.mxu0 %v232
      %279 = vmatprep.subr.mxu0 0.0
      %280 = vmatpush1.msra.mxu0 %v233
      %281 = vmatprep.subr.mxu0 0.0
      %282 = vmatpush1.msra.mxu0 %v234
      %283 = vmatprep.subr.mxu0 0.0
      %284 = vmatpush1.msra.mxu0 0.0
      %285 = vmatprep.subr.mxu0 0.0
      %286 = vmatpush1.msra.mxu0 0.0
      %287 = vmatprep.subr.mxu0 0.0
      %288 = vmatpush1.msra.mxu0 0.0
      %289 = vmatprep.subr.mxu0 0.0
      %290 = vmatpush1.msra.mxu0 0.0
      %291 = vmatprep.subr.mxu0 0.0
      %292 = vmatpush1.msra.mxu0 0.0
      %293 = vmatprep.subr.mxu0 0.0
      %294 = vmatpush1.msra.mxu0 0.0
      %295 = vmatprep.subr.mxu0 0.0
      %296 = vmatpush1.msra.mxu0 0.0
      %297 = vmatprep.subr.mxu0 0.0
      %298 = vmatpush1.msra.mxu0 0.0
      %299 = vmatprep.subr.mxu0 0.0
      %300 = vmatpush1.msra.mxu0 0.0
      %301 = vmatprep.subr.mxu0 0.0
      %302 = vmatpush1.msra.mxu0 0.0
      %303 = vmatprep.subr.mxu0 0.0
      %304 = vmatpush1.msra.mxu0 0.0
      %305 = vmatprep.subr.mxu0 0.0
      %306 = vmatpush1.msra.mxu0 0.0
      %307 = vmatprep.subr.mxu0 0.0
      %308 = vmatpush1.msra.mxu0 0.0
      %309 = vmatprep.subr.mxu0 0.0
      %310 = vmatpush1.msra.mxu0 0.0
      %311 = vmatprep.subr.mxu0 0.0
      %312 = vmatpush1.msra.mxu0 0.0
      %313 = vmatprep.subr.mxu0 0.0
      %314 = vmatpush1.msra.mxu0 0.0
      %315 = vmatprep.mubr.f32.mxu0 0.0
      %316 = vmatmul.mubr.f32.gmra.mrb[0].mxu0 %v211
      %v317 = vpop.f32.mrb[0].mxu0
      %v318 = vadd.f32 0.0, %v317
      %v319 = vpop.f32.mrb[0].mxu0
      %320 = vmatprep.mubr.f32.mxu0 0.0
      %321 = vmatmul.mubr.f32.gmra.mrb[0].mxu0 %v212
      %v322 = vpop.f32.mrb[0].mxu0
      %v323 = vadd.f32 0.0, %v322
      %v324 = vpop.f32.mrb[0].mxu0
      %325 = vmatprep.mubr.f32.mxu0 0.0
      %326 = vmatmul.mubr.f32.gmra.mrb[0].mxu0 %v213
      %v327 = vpop.f32.mrb[0].mxu0
      %v328 = vadd.f32 0.0, %v327
      %v329 = vpop.f32.mrb[0].mxu0
      %330 = vmatprep.mubr.f32.mxu0 0.0
      %331 = vmatmul.mubr.f32.gmra.mrb[0].mxu0 %v214
      %v332 = vpop.f32.mrb[0].mxu0
      %v333 = vadd.f32 0.0, %v332
      %v334 = vpop.f32.mrb[0].mxu0
      %335 = vmatprep.mubr.f32.mxu0 0.0
      %336 = vmatmul.mubr.f32.gmra.mrb[0].mxu0 %v215
      %v337 = vpop.f32.mrb[0].mxu0
      %v338 = vadd.f32 0.0, %v337
      %v339 = vpop.f32.mrb[0].mxu0
      %340 = vmatprep.mubr.f32.mxu0 0.0
      %341 = vmatmul.mubr.f32.gmra.mrb[0].mxu0 %v216
      %v342 = vpop.f32.mrb[0].mxu0
      %v343 = vadd.f32 0.0, %v342
      %v344 = vpop.f32.mrb[0].mxu0
      %345 = vmatprep.mubr.f32.mxu0 0.0
      %346 = vmatmul.mubr.f32.gmra.mrb[0].mxu0 %v217
      %v347 = vpop.f32.mrb[0].mxu0
      %v348 = vadd.f32 0.0, %v347
      %v349 = vpop.f32.mrb[0].mxu0
      %350 = vmatprep.mubr.f32.mxu0 0.0
      %351 = vmatmul.mubr.f32.gmra.mrb[0].mxu0 %v218
      %v352 = vpop.f32.mrb[0].mxu0
      %v353 = vadd.f32 0.0, %v352
      %v354 = vpop.f32.mrb[0].mxu0
      %355 = vdwg.mxu0
      %358 = vrot.lane.b32.xlu0 %v328, 16
      %v359 = vpop.permute.xlu0 %358
      %360 = vrot.lane.b32.xlu0 %v333, 16
      %v361 = vpop.permute.xlu0 %360
      %366 = vrot.lane.b32.xlu0 %v338, 32
      %v367 = vpop.permute.xlu0 %366
      %368 = vrot.lane.b32.xlu0 %v343, 32
      %v369 = vpop.permute.xlu0 %368
      %374 = vrot.lane.b32.xlu0 %v348, 48
      %v375 = vpop.permute.xlu0 %374
      %376 = vrot.lane.b32.xlu0 %v353, 48
      %v377 = vpop.permute.xlu0 %376
      %vm380 = vcmask 130048
      %v381 = vsel %vm380, %v318, %v359
      %v382 = vsel %vm380, %v323, %v361
      %vm383 = vcmask 261120
      %v384 = vsel %vm383, %v381, %v367
      %v385 = vsel %vm383, %v382, %v369
      %vm386 = vcmask 392192
      %v387 = vsel %vm386, %v384, %v375
      %v388 = vsel %vm386, %v385, %v377
      %v390 = vsel %vm380, %v235, 0
      %v393 = vsel %vm380, %v236, 0
      %395 = vmatprep.subr.mxu0 0.0
      %396 = vmatpush1.msra.mxu0 %v387
      %397 = vmatprep.subr.mxu0 0.0
      %398 = vmatpush1.msra.mxu0 %v388
      %399 = vmatprep.subr.mxu0 0.0
      %400 = vmatpush1.msra.mxu0 0.0
      %401 = vmatprep.subr.mxu0 0.0
      %402 = vmatpush1.msra.mxu0 0.0
      %403 = vmatprep.subr.mxu0 0.0
      %404 = vmatpush1.msra.mxu0 0.0
      %405 = vmatprep.subr.mxu0 0.0
      %406 = vmatpush1.msra.mxu0 0.0
      %407 = vmatprep.subr.mxu0 0.0
      %408 = vmatpush1.msra.mxu0 0.0
      %409 = vmatprep.subr.mxu0 0.0
      %410 = vmatpush1.msra.mxu0 0.0
      %411 = vmatprep.subr.mxu0 0.0
      %412 = vmatpush1.msra.mxu0 0.0
      %413 = vmatprep.subr.mxu0 0.0
      %414 = vmatpush1.msra.mxu0 0.0
      %415 = vmatprep.subr.mxu0 0.0
      %416 = vmatpush1.msra.mxu0 0.0
      %417 = vmatprep.subr.mxu0 0.0
      %418 = vmatpush1.msra.mxu0 0.0
      %419 = vmatprep.subr.mxu0 0.0
      %420 = vmatpush1.msra.mxu0 0.0
      %421 = vmatprep.subr.mxu0 0.0
      %422 = vmatpush1.msra.mxu0 0.0
      %423 = vmatprep.subr.mxu0 0.0
      %424 = vmatpush1.msra.mxu0 0.0
      %425 = vmatprep.subr.mxu0 0.0
      %426 = vmatpush1.msra.mxu0 0.0
      %427 = vmatprep.subr.mxu0 0.0
      %428 = vmatpush1.msra.mxu0 0.0
      %429 = vmatprep.subr.mxu0 0.0
      %430 = vmatpush1.msra.mxu0 0.0
      %431 = vmatprep.subr.mxu0 0.0
      %432 = vmatpush1.msra.mxu0 0.0
      %433 = vmatprep.subr.mxu0 0.0
      %434 = vmatpush1.msra.mxu0 0.0
      %435 = vmatprep.subr.mxu0 0.0
      %436 = vmatpush1.msra.mxu0 0.0
      %437 = vmatprep.subr.mxu0 0.0
      %438 = vmatpush1.msra.mxu0 0.0
      %439 = vmatprep.subr.mxu0 0.0
      %440 = vmatpush1.msra.mxu0 0.0
      %441 = vmatprep.subr.mxu0 0.0
      %442 = vmatpush1.msra.mxu0 0.0
      %443 = vmatprep.subr.mxu0 0.0
      %444 = vmatpush1.msra.mxu0 0.0
      %445 = vmatprep.subr.mxu0 0.0
      %446 = vmatpush1.msra.mxu0 0.0
      %447 = vmatprep.subr.mxu0 0.0
      %448 = vmatpush1.msra.mxu0 0.0
      %449 = vmatprep.subr.mxu0 0.0
      %450 = vmatpush1.msra.mxu0 0.0
      %451 = vmatprep.subr.mxu0 0.0
      %452 = vmatpush1.msra.mxu0 0.0
      %453 = vmatprep.subr.mxu0 0.0
      %454 = vmatpush1.msra.mxu0 0.0
      %455 = vmatprep.subr.mxu0 0.0
      %456 = vmatpush1.msra.mxu0 0.0
      %457 = vmatprep.subr.mxu0 0.0
      %458 = vmatpush1.msra.mxu0 0.0
      %459 = vmatprep.mubr.f32.mxu0 0.0
      %460 = vmatmul.mubr.f32.gmra.mrb[0].mxu0 %v390
      %v461 = vpop.f32.mrb[0].mxu0
      %v462 = vadd.f32 0.0, %v461
      %v463 = vpop.f32.mrb[0].mxu0
      %464 = vmatprep.mubr.f32.mxu0 0.0
      %465 = vmatmul.mubr.f32.gmra.mrb[0].mxu0 %v393
      %v466 = vpop.f32.mrb[0].mxu0
      %v467 = vadd.f32 0.0, %v466
      %v468 = vpop.f32.mrb[0].mxu0
      %469 = vdwg.mxu0
      %472 = vrot.lane.b32.xlu0 %v318, 112
      %v473 = vpop.permute.xlu0 %472
      %474 = vrot.lane.b32.xlu0 %v323, 112
      %v475 = vpop.permute.xlu0 %474
      %478 = vrot.lane.b32.xlu0 %v338, 16
      %v479 = vpop.permute.xlu0 %478
      %480 = vrot.lane.b32.xlu0 %v343, 16
      %v481 = vpop.permute.xlu0 %480
      %484 = vrot.lane.b32.xlu0 %v348, 32
      %v485 = vpop.permute.xlu0 %484
      %486 = vrot.lane.b32.xlu0 %v353, 32
      %v487 = vpop.permute.xlu0 %486
      %v490 = vsel %vm380, %v473, %v328
      %v491 = vsel %vm380, %v475, %v333
      %v492 = vsel %vm383, %v490, %v479
      %v493 = vsel %vm383, %v491, %v481
      %v494 = vsel %vm386, %v492, %v485
      %v495 = vsel %vm386, %v493, %v487
      %v497 = vsel %vm380, %v237, 0
      %v500 = vsel %vm380, %v238, 0
      %502 = vmatprep.subr.mxu0 0.0
      %503 = vmatpush1.msra.mxu0 %v494
      %504 = vmatprep.subr.mxu0 0.0
      %505 = vmatpush1.msra.mxu0 %v495
      %506 = vmatprep.subr.mxu0 0.0
      %507 = vmatpush1.msra.mxu0 0.0
      %508 = vmatprep.subr.mxu0 0.0
      %509 = vmatpush1.msra.mxu0 0.0
      %510 = vmatprep.subr.mxu0 0.0
      %511 = vmatpush1.msra.mxu0 0.0
      %512 = vmatprep.subr.mxu0 0.0
      %513 = vmatpush1.msra.mxu0 0.0
      %514 = vmatprep.subr.mxu0 0.0
      %515 = vmatpush1.msra.mxu0 0.0
      %516 = vmatprep.subr.mxu0 0.0
      %517 = vmatpush1.msra.mxu0 0.0
      %518 = vmatprep.subr.mxu0 0.0
      %519 = vmatpush1.msra.mxu0 0.0
      %520 = vmatprep.subr.mxu0 0.0
      %521 = vmatpush1.msra.mxu0 0.0
      %522 = vmatprep.subr.mxu0 0.0
      %523 = vmatpush1.msra.mxu0 0.0
      %524 = vmatprep.subr.mxu0 0.0
      %525 = vmatpush1.msra.mxu0 0.0
      %526 = vmatprep.subr.mxu0 0.0
      %527 = vmatpush1.msra.mxu0 0.0
      %528 = vmatprep.subr.mxu0 0.0
      %529 = vmatpush1.msra.mxu0 0.0
      %530 = vmatprep.subr.mxu0 0.0
      %531 = vmatpush1.msra.mxu0 0.0
      %532 = vmatprep.subr.mxu0 0.0
      %533 = vmatpush1.msra.mxu0 0.0
      %534 = vmatprep.subr.mxu0 0.0
      %535 = vmatpush1.msra.mxu0 0.0
      %536 = vmatprep.subr.mxu0 0.0
      %537 = vmatpush1.msra.mxu0 0.0
      %538 = vmatprep.subr.mxu0 0.0
      %539 = vmatpush1.msra.mxu0 0.0
      %540 = vmatprep.subr.mxu0 0.0
      %541 = vmatpush1.msra.mxu0 0.0
      %542 = vmatprep.subr.mxu0 0.0
      %543 = vmatpush1.msra.mxu0 0.0
      %544 = vmatprep.subr.mxu0 0.0
      %545 = vmatpush1.msra.mxu0 0.0
      %546 = vmatprep.subr.mxu0 0.0
      %547 = vmatpush1.msra.mxu0 0.0
      %548 = vmatprep.subr.mxu0 0.0
      %549 = vmatpush1.msra.mxu0 0.0
      %550 = vmatprep.subr.mxu0 0.0
      %551 = vmatpush1.msra.mxu0 0.0
      %552 = vmatprep.subr.mxu0 0.0
      %553 = vmatpush1.msra.mxu0 0.0
      %554 = vmatprep.subr.mxu0 0.0
      %555 = vmatpush1.msra.mxu0 0.0
      %556 = vmatprep.subr.mxu0 0.0
      %557 = vmatpush1.msra.mxu0 0.0
      %558 = vmatprep.subr.mxu0 0.0
      %559 = vmatpush1.msra.mxu0 0.0
      %560 = vmatprep.subr.mxu0 0.0
      %561 = vmatpush1.msra.mxu0 0.0
      %562 = vmatprep.subr.mxu0 0.0
      %563 = vmatpush1.msra.mxu0 0.0
      %564 = vmatprep.subr.mxu0 0.0
      %565 = vmatpush1.msra.mxu0 0.0
      %566 = vmatprep.mubr.f32.mxu0 0.0
      %567 = vmatmul.mubr.f32.gmra.mrb[0].mxu0 %v497
      %v568 = vpop.f32.mrb[0].mxu0
      %v569 = vadd.f32 0.0, %v568
      %v570 = vpop.f32.mrb[0].mxu0
      %571 = vmatprep.mubr.f32.mxu0 0.0
      %572 = vmatmul.mubr.f32.gmra.mrb[0].mxu0 %v500
      %v573 = vpop.f32.mrb[0].mxu0
      %v574 = vadd.f32 0.0, %v573
      %v575 = vpop.f32.mrb[0].mxu0
      %576 = vdwg.mxu0
      %577 = vrot.lane.b32.xlu0 %v318, 96
      %v578 = vpop.permute.xlu0 %577
      %579 = vrot.lane.b32.xlu0 %v323, 96
      %v580 = vpop.permute.xlu0 %579
      %583 = vrot.lane.b32.xlu0 %v328, 112
      %v584 = vpop.permute.xlu0 %583
      %585 = vrot.lane.b32.xlu0 %v333, 112
      %v586 = vpop.permute.xlu0 %585
      %589 = vrot.lane.b32.xlu0 %v348, 16
      %v590 = vpop.permute.xlu0 %589
      %591 = vrot.lane.b32.xlu0 %v353, 16
      %v592 = vpop.permute.xlu0 %591
      %v595 = vsel %vm380, %v578, %v584
      %v596 = vsel %vm380, %v580, %v586
      %v597 = vsel %vm383, %v595, %v338
      %v598 = vsel %vm383, %v596, %v343
      %v599 = vsel %vm386, %v597, %v590
      %v600 = vsel %vm386, %v598, %v592
      %v602 = vsel %vm380, %v239, 0
      %v605 = vsel %vm380, %v240, 0
      %607 = vmatprep.subr.mxu0 0.0
      %608 = vmatpush1.msra.mxu0 %v599
      %609 = vmatprep.subr.mxu0 0.0
      %610 = vmatpush1.msra.mxu0 %v600
      %611 = vmatprep.subr.mxu0 0.0
      %612 = vmatpush1.msra.mxu0 0.0
      %613 = vmatprep.subr.mxu0 0.0
      %614 = vmatpush1.msra.mxu0 0.0
      %615 = vmatprep.subr.mxu0 0.0
      %616 = vmatpush1.msra.mxu0 0.0
      %617 = vmatprep.subr.mxu0 0.0
      %618 = vmatpush1.msra.mxu0 0.0
      %619 = vmatprep.subr.mxu0 0.0
      %620 = vmatpush1.msra.mxu0 0.0
      %621 = vmatprep.subr.mxu0 0.0
      %622 = vmatpush1.msra.mxu0 0.0
      %623 = vmatprep.subr.mxu0 0.0
      %624 = vmatpush1.msra.mxu0 0.0
      %625 = vmatprep.subr.mxu0 0.0
      %626 = vmatpush1.msra.mxu0 0.0
      %627 = vmatprep.subr.mxu0 0.0
      %628 = vmatpush1.msra.mxu0 0.0
      %629 = vmatprep.subr.mxu0 0.0
      %630 = vmatpush1.msra.mxu0 0.0
      %631 = vmatprep.subr.mxu0 0.0
      %632 = vmatpush1.msra.mxu0 0.0
      %633 = vmatprep.subr.mxu0 0.0
      %634 = vmatpush1.msra.mxu0 0.0
      %635 = vmatprep.subr.mxu0 0.0
      %636 = vmatpush1.msra.mxu0 0.0
      %637 = vmatprep.subr.mxu0 0.0
      %638 = vmatpush1.msra.mxu0 0.0
      %639 = vmatprep.subr.mxu0 0.0
      %640 = vmatpush1.msra.mxu0 0.0
      %641 = vmatprep.subr.mxu0 0.0
      %642 = vmatpush1.msra.mxu0 0.0
      %643 = vmatprep.subr.mxu0 0.0
      %644 = vmatpush1.msra.mxu0 0.0
      %645 = vmatprep.subr.mxu0 0.0
      %646 = vmatpush1.msra.mxu0 0.0
      %647 = vmatprep.subr.mxu0 0.0
      %648 = vmatpush1.msra.mxu0 0.0
      %649 = vmatprep.subr.mxu0 0.0
      %650 = vmatpush1.msra.mxu0 0.0
      %651 = vmatprep.subr.mxu0 0.0
      %652 = vmatpush1.msra.mxu0 0.0
      %653 = vmatprep.subr.mxu0 0.0
      %654 = vmatpush1.msra.mxu0 0.0
      %655 = vmatprep.subr.mxu0 0.0
      %656 = vmatpush1.msra.mxu0 0.0
      %657 = vmatprep.subr.mxu0 0.0
      %658 = vmatpush1.msra.mxu0 0.0
      %659 = vmatprep.subr.mxu0 0.0
      %660 = vmatpush1.msra.mxu0 0.0
      %661 = vmatprep.subr.mxu0 0.0
      %662 = vmatpush1.msra.mxu0 0.0
      %663 = vmatprep.subr.mxu0 0.0
      %664 = vmatpush1.msra.mxu0 0.0
      %665 = vmatprep.subr.mxu0 0.0
      %666 = vmatpush1.msra.mxu0 0.0
      %667 = vmatprep.subr.mxu0 0.0
      %668 = vmatpush1.msra.mxu0 0.0
      %669 = vmatprep.subr.mxu0 0.0
      %670 = vmatpush1.msra.mxu0 0.0
      %671 = vmatprep.mubr.f32.mxu0 0.0
      %672 = vmatmul.mubr.f32.gmra.mrb[0].mxu0 %v602
      %v673 = vpop.f32.mrb[0].mxu0
      %v674 = vadd.f32 0.0, %v673
      %v675 = vpop.f32.mrb[0].mxu0
      %676 = vmatprep.mubr.f32.mxu0 0.0
      %677 = vmatmul.mubr.f32.gmra.mrb[0].mxu0 %v605
      %v678 = vpop.f32.mrb[0].mxu0
      %v679 = vadd.f32 0.0, %v678
      %v680 = vpop.f32.mrb[0].mxu0
      %681 = vdwg.mxu0
      %682 = vrot.lane.b32.xlu0 %v318, 80
      %v683 = vpop.permute.xlu0 %682
      %684 = vrot.lane.b32.xlu0 %v323, 80
      %v685 = vpop.permute.xlu0 %684
      %688 = vrot.lane.b32.xlu0 %v328, 96
      %v689 = vpop.permute.xlu0 %688
      %690 = vrot.lane.b32.xlu0 %v333, 96
      %v691 = vpop.permute.xlu0 %690
      %694 = vrot.lane.b32.xlu0 %v338, 112
      %v695 = vpop.permute.xlu0 %694
      %696 = vrot.lane.b32.xlu0 %v343, 112
      %v697 = vpop.permute.xlu0 %696
      %v700 = vsel %vm380, %v683, %v689
      %v701 = vsel %vm380, %v685, %v691
      %v702 = vsel %vm383, %v700, %v695
      %v703 = vsel %vm383, %v701, %v697
      %v704 = vsel %vm386, %v702, %v348
      %v705 = vsel %vm386, %v703, %v353
      %v707 = vsel %vm380, %v241, 0
      %v710 = vsel %vm380, %v242, 0
      %712 = vmatprep.subr.mxu0 0.0
      %713 = vmatpush1.msra.mxu0 %v704
      %714 = vmatprep.subr.mxu0 0.0
      %715 = vmatpush1.msra.mxu0 %v705
      %716 = vmatprep.subr.mxu0 0.0
      %717 = vmatpush1.msra.mxu0 0.0
      %718 = vmatprep.subr.mxu0 0.0
      %719 = vmatpush1.msra.mxu0 0.0
      %720 = vmatprep.subr.mxu0 0.0
      %721 = vmatpush1.msra.mxu0 0.0
      %722 = vmatprep.subr.mxu0 0.0
      %723 = vmatpush1.msra.mxu0 0.0
      %724 = vmatprep.subr.mxu0 0.0
      %725 = vmatpush1.msra.mxu0 0.0
      %726 = vmatprep.subr.mxu0 0.0
      %727 = vmatpush1.msra.mxu0 0.0
      %728 = vmatprep.subr.mxu0 0.0
      %729 = vmatpush1.msra.mxu0 0.0
      %730 = vmatprep.subr.mxu0 0.0
      %731 = vmatpush1.msra.mxu0 0.0
      %732 = vmatprep.subr.mxu0 0.0
      %733 = vmatpush1.msra.mxu0 0.0
      %734 = vmatprep.subr.mxu0 0.0
      %735 = vmatpush1.msra.mxu0 0.0
      %736 = vmatprep.subr.mxu0 0.0
      %737 = vmatpush1.msra.mxu0 0.0
      %738 = vmatprep.subr.mxu0 0.0
      %739 = vmatpush1.msra.mxu0 0.0
      %740 = vmatprep.subr.mxu0 0.0
      %741 = vmatpush1.msra.mxu0 0.0
      %742 = vmatprep.subr.mxu0 0.0
      %743 = vmatpush1.msra.mxu0 0.0
      %744 = vmatprep.subr.mxu0 0.0
      %745 = vmatpush1.msra.mxu0 0.0
      %746 = vmatprep.subr.mxu0 0.0
      %747 = vmatpush1.msra.mxu0 0.0
      %748 = vmatprep.subr.mxu0 0.0
      %749 = vmatpush1.msra.mxu0 0.0
      %750 = vmatprep.subr.mxu0 0.0
      %751 = vmatpush1.msra.mxu0 0.0
      %752 = vmatprep.subr.mxu0 0.0
      %753 = vmatpush1.msra.mxu0 0.0
      %754 = vmatprep.subr.mxu0 0.0
      %755 = vmatpush1.msra.mxu0 0.0
      %756 = vmatprep.subr.mxu0 0.0
      %757 = vmatpush1.msra.mxu0 0.0
      %758 = vmatprep.subr.mxu0 0.0
      %759 = vmatpush1.msra.mxu0 0.0
      %760 = vmatprep.subr.mxu0 0.0
      %761 = vmatpush1.msra.mxu0 0.0
      %762 = vmatprep.subr.mxu0 0.0
      %763 = vmatpush1.msra.mxu0 0.0
      %764 = vmatprep.subr.mxu0 0.0
      %765 = vmatpush1.msra.mxu0 0.0
      %766 = vmatprep.subr.mxu0 0.0
      %767 = vmatpush1.msra.mxu0 0.0
      %768 = vmatprep.subr.mxu0 0.0
      %769 = vmatpush1.msra.mxu0 0.0
      %770 = vmatprep.subr.mxu0 0.0
      %771 = vmatpush1.msra.mxu0 0.0
      %772 = vmatprep.subr.mxu0 0.0
      %773 = vmatpush1.msra.mxu0 0.0
      %774 = vmatprep.subr.mxu0 0.0
      %775 = vmatpush1.msra.mxu0 0.0
      %776 = vmatprep.mubr.f32.mxu0 0.0
      %777 = vmatmul.mubr.f32.gmra.mrb[0].mxu0 %v707
      %v778 = vpop.f32.mrb[0].mxu0
      %v779 = vadd.f32 0.0, %v778
      %v780 = vpop.f32.mrb[0].mxu0
      %781 = vmatprep.mubr.f32.mxu0 0.0
      %782 = vmatmul.mubr.f32.gmra.mrb[0].mxu0 %v710
      %v783 = vpop.f32.mrb[0].mxu0
      %v784 = vadd.f32 0.0, %v783
      %v785 = vpop.f32.mrb[0].mxu0
      %786 = vdwg.mxu0
      %787 = vrot.lane.b32.xlu0 %v318, 64
      %v788 = vpop.permute.xlu0 %787
      %789 = vrot.lane.b32.xlu0 %v323, 64
      %v790 = vpop.permute.xlu0 %789
      %793 = vrot.lane.b32.xlu0 %v328, 80
      %v794 = vpop.permute.xlu0 %793
      %795 = vrot.lane.b32.xlu0 %v333, 80
      %v796 = vpop.permute.xlu0 %795
      %799 = vrot.lane.b32.xlu0 %v338, 96
      %v800 = vpop.permute.xlu0 %799
      %801 = vrot.lane.b32.xlu0 %v343, 96
      %v802 = vpop.permute.xlu0 %801
      %805 = vrot.lane.b32.xlu0 %v348, 112
      %v806 = vpop.permute.xlu0 %805
      %807 = vrot.lane.b32.xlu0 %v353, 112
      %v808 = vpop.permute.xlu0 %807
      %v811 = vsel %vm380, %v788, %v794
      %v812 = vsel %vm380, %v790, %v796
      %v813 = vsel %vm383, %v811, %v800
      %v814 = vsel %vm383, %v812, %v802
      %v815 = vsel %vm386, %v813, %v806
      %v816 = vsel %vm386, %v814, %v808
      %v818 = vsel %vm380, %v243, 0
      %v821 = vsel %vm380, %v244, 0
      %823 = vmatprep.subr.mxu0 0.0
      %824 = vmatpush1.msra.mxu0 %v815
      %825 = vmatprep.subr.mxu0 0.0
      %826 = vmatpush1.msra.mxu0 %v816
      %827 = vmatprep.subr.mxu0 0.0
      %828 = vmatpush1.msra.mxu0 0.0
      %829 = vmatprep.subr.mxu0 0.0
      %830 = vmatpush1.msra.mxu0 0.0
      %831 = vmatprep.subr.mxu0 0.0
      %832 = vmatpush1.msra.mxu0 0.0
      %833 = vmatprep.subr.mxu0 0.0
      %834 = vmatpush1.msra.mxu0 0.0
      %835 = vmatprep.subr.mxu0 0.0
      %836 = vmatpush1.msra.mxu0 0.0
      %837 = vmatprep.subr.mxu0 0.0
      %838 = vmatpush1.msra.mxu0 0.0
      %839 = vmatprep.subr.mxu0 0.0
      %840 = vmatpush1.msra.mxu0 0.0
      %841 = vmatprep.subr.mxu0 0.0
      %842 = vmatpush1.msra.mxu0 0.0
      %843 = vmatprep.subr.mxu0 0.0
      %844 = vmatpush1.msra.mxu0 0.0
      %845 = vmatprep.subr.mxu0 0.0
      %846 = vmatpush1.msra.mxu0 0.0
      %847 = vmatprep.subr.mxu0 0.0
      %848 = vmatpush1.msra.mxu0 0.0
      %849 = vmatprep.subr.mxu0 0.0
      %850 = vmatpush1.msra.mxu0 0.0
      %851 = vmatprep.subr.mxu0 0.0
      %852 = vmatpush1.msra.mxu0 0.0
      %853 = vmatprep.subr.mxu0 0.0
      %854 = vmatpush1.msra.mxu0 0.0
      %855 = vmatprep.subr.mxu0 0.0
      %856 = vmatpush1.msra.mxu0 0.0
      %857 = vmatprep.subr.mxu0 0.0
      %858 = vmatpush1.msra.mxu0 0.0
      %859 = vmatprep.subr.mxu0 0.0
      %860 = vmatpush1.msra.mxu0 0.0
      %861 = vmatprep.subr.mxu0 0.0
      %862 = vmatpush1.msra.mxu0 0.0
      %863 = vmatprep.subr.mxu0 0.0
      %864 = vmatpush1.msra.mxu0 0.0
      %865 = vmatprep.subr.mxu0 0.0
      %866 = vmatpush1.msra.mxu0 0.0
      %867 = vmatprep.subr.mxu0 0.0
      %868 = vmatpush1.msra.mxu0 0.0
      %869 = vmatprep.subr.mxu0 0.0
      %870 = vmatpush1.msra.mxu0 0.0
      %871 = vmatprep.subr.mxu0 0.0
      %872 = vmatpush1.msra.mxu0 0.0
      %873 = vmatprep.subr.mxu0 0.0
      %874 = vmatpush1.msra.mxu0 0.0
      %875 = vmatprep.subr.mxu0 0.0
      %876 = vmatpush1.msra.mxu0 0.0
      %877 = vmatprep.subr.mxu0 0.0
      %878 = vmatpush1.msra.mxu0 0.0
      %879 = vmatprep.subr.mxu0 0.0
      %880 = vmatpush1.msra.mxu0 0.0
      %881 = vmatprep.subr.mxu0 0.0
      %882 = vmatpush1.msra.mxu0 0.0
      %883 = vmatprep.subr.mxu0 0.0
      %884 = vmatpush1.msra.mxu0 0.0
      %885 = vmatprep.subr.mxu0 0.0
      %886 = vmatpush1.msra.mxu0 0.0
      %887 = vmatprep.mubr.f32.mxu0 0.0
      %888 = vmatmul.mubr.f32.gmra.mrb[0].mxu0 %v818
      %v889 = vpop.f32.mrb[0].mxu0
      %v890 = vadd.f32 0.0, %v889
      %v891 = vpop.f32.mrb[0].mxu0
      %892 = vmatprep.mubr.f32.mxu0 0.0
      %893 = vmatmul.mubr.f32.gmra.mrb[0].mxu0 %v821
      %v894 = vpop.f32.mrb[0].mxu0
      %v895 = vadd.f32 0.0, %v894
      %v896 = vpop.f32.mrb[0].mxu0
      %897 = vdwg.mxu0
      %898 = vrot.lane.b32.xlu0 %v318, 48
      %v899 = vpop.permute.xlu0 %898
      %900 = vrot.lane.b32.xlu0 %v323, 48
      %v901 = vpop.permute.xlu0 %900
      %904 = vrot.lane.b32.xlu0 %v328, 64
      %v905 = vpop.permute.xlu0 %904
      %906 = vrot.lane.b32.xlu0 %v333, 64
      %v907 = vpop.permute.xlu0 %906
      %910 = vrot.lane.b32.xlu0 %v338, 80
      %v911 = vpop.permute.xlu0 %910
      %912 = vrot.lane.b32.xlu0 %v343, 80
      %v913 = vpop.permute.xlu0 %912
      %916 = vrot.lane.b32.xlu0 %v348, 96
      %v917 = vpop.permute.xlu0 %916
      %918 = vrot.lane.b32.xlu0 %v353, 96
      %v919 = vpop.permute.xlu0 %918
      %v922 = vsel %vm380, %v899, %v905
      %v923 = vsel %vm380, %v901, %v907
      %v924 = vsel %vm383, %v922, %v911
      %v925 = vsel %vm383, %v923, %v913
      %v926 = vsel %vm386, %v924, %v917
      %v927 = vsel %vm386, %v925, %v919
      %v929 = vsel %vm380, %v245, 0
      %v932 = vsel %vm380, %v246, 0
      %934 = vmatprep.subr.mxu0 0.0
      %935 = vmatpush1.msra.mxu0 %v926
      %936 = vmatprep.subr.mxu0 0.0
      %937 = vmatpush1.msra.mxu0 %v927
      %938 = vmatprep.subr.mxu0 0.0
      %939 = vmatpush1.msra.mxu0 0.0
      %940 = vmatprep.subr.mxu0 0.0
      %941 = vmatpush1.msra.mxu0 0.0
      %942 = vmatprep.subr.mxu0 0.0
      %943 = vmatpush1.msra.mxu0 0.0
      %944 = vmatprep.subr.mxu0 0.0
      %945 = vmatpush1.msra.mxu0 0.0
      %946 = vmatprep.subr.mxu0 0.0
      %947 = vmatpush1.msra.mxu0 0.0
      %948 = vmatprep.subr.mxu0 0.0
      %949 = vmatpush1.msra.mxu0 0.0
      %950 = vmatprep.subr.mxu0 0.0
      %951 = vmatpush1.msra.mxu0 0.0
      %952 = vmatprep.subr.mxu0 0.0
      %953 = vmatpush1.msra.mxu0 0.0
      %954 = vmatprep.subr.mxu0 0.0
      %955 = vmatpush1.msra.mxu0 0.0
      %956 = vmatprep.subr.mxu0 0.0
      %957 = vmatpush1.msra.mxu0 0.0
      %958 = vmatprep.subr.mxu0 0.0
      %959 = vmatpush1.msra.mxu0 0.0
      %960 = vmatprep.subr.mxu0 0.0
      %961 = vmatpush1.msra.mxu0 0.0
      %962 = vmatprep.subr.mxu0 0.0
      %963 = vmatpush1.msra.mxu0 0.0
      %964 = vmatprep.subr.mxu0 0.0
      %965 = vmatpush1.msra.mxu0 0.0
      %966 = vmatprep.subr.mxu0 0.0
      %967 = vmatpush1.msra.mxu0 0.0
      %968 = vmatprep.subr.mxu0 0.0
      %969 = vmatpush1.msra.mxu0 0.0
      %970 = vmatprep.subr.mxu0 0.0
      %971 = vmatpush1.msra.mxu0 0.0
      %972 = vmatprep.subr.mxu0 0.0
      %973 = vmatpush1.msra.mxu0 0.0
      %974 = vmatprep.subr.mxu0 0.0
      %975 = vmatpush1.msra.mxu0 0.0
      %976 = vmatprep.subr.mxu0 0.0
      %977 = vmatpush1.msra.mxu0 0.0
      %978 = vmatprep.subr.mxu0 0.0
      %979 = vmatpush1.msra.mxu0 0.0
      %980 = vmatprep.subr.mxu0 0.0
      %981 = vmatpush1.msra.mxu0 0.0
      %982 = vmatprep.subr.mxu0 0.0
      %983 = vmatpush1.msra.mxu0 0.0
      %984 = vmatprep.subr.mxu0 0.0
      %985 = vmatpush1.msra.mxu0 0.0
      %986 = vmatprep.subr.mxu0 0.0
      %987 = vmatpush1.msra.mxu0 0.0
      %988 = vmatprep.subr.mxu0 0.0
      %989 = vmatpush1.msra.mxu0 0.0
      %990 = vmatprep.subr.mxu0 0.0
      %991 = vmatpush1.msra.mxu0 0.0
      %992 = vmatprep.subr.mxu0 0.0
      %993 = vmatpush1.msra.mxu0 0.0
      %994 = vmatprep.subr.mxu0 0.0
      %995 = vmatpush1.msra.mxu0 0.0
      %996 = vmatprep.subr.mxu0 0.0
      %997 = vmatpush1.msra.mxu0 0.0
      %998 = vmatprep.mubr.f32.mxu0 0.0
      %999 = vmatmul.mubr.f32.gmra.mrb[0].mxu0 %v929
      %v1000 = vpop.f32.mrb[0].mxu0
      %v1001 = vadd.f32 0.0, %v1000
      %v1002 = vpop.f32.mrb[0].mxu0
      %1003 = vmatprep.mubr.f32.mxu0 0.0
      %1004 = vmatmul.mubr.f32.gmra.mrb[0].mxu0 %v932
      %v1005 = vpop.f32.mrb[0].mxu0
      %v1006 = vadd.f32 0.0, %v1005
      %v1007 = vpop.f32.mrb[0].mxu0
      %1008 = vdwg.mxu0
      %1009 = vrot.lane.b32.xlu0 %v318, 32
      %v1010 = vpop.permute.xlu0 %1009
      %1011 = vrot.lane.b32.xlu0 %v323, 32
      %v1012 = vpop.permute.xlu0 %1011
      %1015 = vrot.lane.b32.xlu0 %v328, 48
      %v1016 = vpop.permute.xlu0 %1015
      %1017 = vrot.lane.b32.xlu0 %v333, 48
      %v1018 = vpop.permute.xlu0 %1017
      %1021 = vrot.lane.b32.xlu0 %v338, 64
      %v1022 = vpop.permute.xlu0 %1021
      %1023 = vrot.lane.b32.xlu0 %v343, 64
      %v1024 = vpop.permute.xlu0 %1023
      %1027 = vrot.lane.b32.xlu0 %v348, 80
      %v1028 = vpop.permute.xlu0 %1027
      %1029 = vrot.lane.b32.xlu0 %v353, 80
      %v1030 = vpop.permute.xlu0 %1029
      %v1033 = vsel %vm380, %v1010, %v1016
      %v1034 = vsel %vm380, %v1012, %v1018
      %v1035 = vsel %vm383, %v1033, %v1022
      %v1036 = vsel %vm383, %v1034, %v1024
      %v1037 = vsel %vm386, %v1035, %v1028
      %v1038 = vsel %vm386, %v1036, %v1030
      %v1040 = vsel %vm380, %v247, 0
      %v1043 = vsel %vm380, %v248, 0
      %1045 = vmatprep.subr.mxu0 0.0
      %1046 = vmatpush1.msra.mxu0 %v1037
      %1047 = vmatprep.subr.mxu0 0.0
      %1048 = vmatpush1.msra.mxu0 %v1038
      %1049 = vmatprep.subr.mxu0 0.0
      %1050 = vmatpush1.msra.mxu0 0.0
      %1051 = vmatprep.subr.mxu0 0.0
      %1052 = vmatpush1.msra.mxu0 0.0
      %1053 = vmatprep.subr.mxu0 0.0
      %1054 = vmatpush1.msra.mxu0 0.0
      %1055 = vmatprep.subr.mxu0 0.0
      %1056 = vmatpush1.msra.mxu0 0.0
      %1057 = vmatprep.subr.mxu0 0.0
      %1058 = vmatpush1.msra.mxu0 0.0
      %1059 = vmatprep.subr.mxu0 0.0
      %1060 = vmatpush1.msra.mxu0 0.0
      %1061 = vmatprep.subr.mxu0 0.0
      %1062 = vmatpush1.msra.mxu0 0.0
      %1063 = vmatprep.subr.mxu0 0.0
      %1064 = vmatpush1.msra.mxu0 0.0
      %1065 = vmatprep.subr.mxu0 0.0
      %1066 = vmatpush1.msra.mxu0 0.0
      %1067 = vmatprep.subr.mxu0 0.0
      %1068 = vmatpush1.msra.mxu0 0.0
      %1069 = vmatprep.subr.mxu0 0.0
      %1070 = vmatpush1.msra.mxu0 0.0
      %1071 = vmatprep.subr.mxu0 0.0
      %1072 = vmatpush1.msra.mxu0 0.0
      %1073 = vmatprep.subr.mxu0 0.0
      %1074 = vmatpush1.msra.mxu0 0.0
      %1075 = vmatprep.subr.mxu0 0.0
      %1076 = vmatpush1.msra.mxu0 0.0
      %1077 = vmatprep.subr.mxu0 0.0
      %1078 = vmatpush1.msra.mxu0 0.0
      %1079 = vmatprep.subr.mxu0 0.0
      %1080 = vmatpush1.msra.mxu0 0.0
      %1081 = vmatprep.subr.mxu0 0.0
      %1082 = vmatpush1.msra.mxu0 0.0
      %1083 = vmatprep.subr.mxu0 0.0
      %1084 = vmatpush1.msra.mxu0 0.0
      %1085 = vmatprep.subr.mxu0 0.0
      %1086 = vmatpush1.msra.mxu0 0.0
      %1087 = vmatprep.subr.mxu0 0.0
      %1088 = vmatpush1.msra.mxu0 0.0
      %1089 = vmatprep.subr.mxu0 0.0
      %1090 = vmatpush1.msra.mxu0 0.0
      %1091 = vmatprep.subr.mxu0 0.0
      %1092 = vmatpush1.msra.mxu0 0.0
      %1093 = vmatprep.subr.mxu0 0.0
      %1094 = vmatpush1.msra.mxu0 0.0
      %1095 = vmatprep.subr.mxu0 0.0
      %1096 = vmatpush1.msra.mxu0 0.0
      %1097 = vmatprep.subr.mxu0 0.0
      %1098 = vmatpush1.msra.mxu0 0.0
      %1099 = vmatprep.subr.mxu0 0.0
      %1100 = vmatpush1.msra.mxu0 0.0
      %1101 = vmatprep.subr.mxu0 0.0
      %1102 = vmatpush1.msra.mxu0 0.0
      %1103 = vmatprep.subr.mxu0 0.0
      %1104 = vmatpush1.msra.mxu0 0.0
      %1105 = vmatprep.subr.mxu0 0.0
      %1106 = vmatpush1.msra.mxu0 0.0
      %1107 = vmatprep.subr.mxu0 0.0
      %1108 = vmatpush1.msra.mxu0 0.0
      %1109 = vmatprep.mubr.f32.mxu0 0.0
      %1110 = vmatmul.mubr.f32.gmra.mrb[0].mxu0 %v1040
      %v1111 = vpop.f32.mrb[0].mxu0
      %v1112 = vadd.f32 0.0, %v1111
      %v1113 = vpop.f32.mrb[0].mxu0
      %1114 = vmatprep.mubr.f32.mxu0 0.0
      %1115 = vmatmul.mubr.f32.gmra.mrb[0].mxu0 %v1043
      %v1116 = vpop.f32.mrb[0].mxu0
      %v1117 = vadd.f32 0.0, %v1116
      %v1118 = vpop.f32.mrb[0].mxu0
      %1119 = vdwg.mxu0
      %1120 = vrot.lane.b32.xlu0 %v318, 16
      %v1121 = vpop.permute.xlu0 %1120
      %1122 = vrot.lane.b32.xlu0 %v323, 16
      %v1123 = vpop.permute.xlu0 %1122
      %1126 = vrot.lane.b32.xlu0 %v328, 32
      %v1127 = vpop.permute.xlu0 %1126
      %1128 = vrot.lane.b32.xlu0 %v333, 32
      %v1129 = vpop.permute.xlu0 %1128
      %1132 = vrot.lane.b32.xlu0 %v338, 48
      %v1133 = vpop.permute.xlu0 %1132
      %1134 = vrot.lane.b32.xlu0 %v343, 48
      %v1135 = vpop.permute.xlu0 %1134
      %1138 = vrot.lane.b32.xlu0 %v348, 64
      %v1139 = vpop.permute.xlu0 %1138
      %1140 = vrot.lane.b32.xlu0 %v353, 64
      %v1141 = vpop.permute.xlu0 %1140
      %v1144 = vsel %vm380, %v1121, %v1127
      %v1145 = vsel %vm380, %v1123, %v1129
      %v1146 = vsel %vm383, %v1144, %v1133
      %v1147 = vsel %vm383, %v1145, %v1135
      %v1148 = vsel %vm386, %v1146, %v1139
      %v1149 = vsel %vm386, %v1147, %v1141
      %v1151 = vsel %vm380, %v249, 0
      %v1154 = vsel %vm380, %v250, 0
      %1156 = vmatprep.subr.mxu0 0.0
      %1157 = vmatpush1.msra.mxu0 %v1148
      %1158 = vmatprep.subr.mxu0 0.0
      %1159 = vmatpush1.msra.mxu0 %v1149
      %1160 = vmatprep.subr.mxu0 0.0
      %1161 = vmatpush1.msra.mxu0 0.0
      %1162 = vmatprep.subr.mxu0 0.0
      %1163 = vmatpush1.msra.mxu0 0.0
      %1164 = vmatprep.subr.mxu0 0.0
      %1165 = vmatpush1.msra.mxu0 0.0
      %1166 = vmatprep.subr.mxu0 0.0
      %1167 = vmatpush1.msra.mxu0 0.0
      %1168 = vmatprep.subr.mxu0 0.0
      %1169 = vmatpush1.msra.mxu0 0.0
      %1170 = vmatprep.subr.mxu0 0.0
      %1171 = vmatpush1.msra.mxu0 0.0
      %1172 = vmatprep.subr.mxu0 0.0
      %1173 = vmatpush1.msra.mxu0 0.0
      %1174 = vmatprep.subr.mxu0 0.0
      %1175 = vmatpush1.msra.mxu0 0.0
      %1176 = vmatprep.subr.mxu0 0.0
      %1177 = vmatpush1.msra.mxu0 0.0
      %1178 = vmatprep.subr.mxu0 0.0
      %1179 = vmatpush1.msra.mxu0 0.0
      %1180 = vmatprep.subr.mxu0 0.0
      %1181 = vmatpush1.msra.mxu0 0.0
      %1182 = vmatprep.subr.mxu0 0.0
      %1183 = vmatpush1.msra.mxu0 0.0
      %1184 = vmatprep.subr.mxu0 0.0
      %1185 = vmatpush1.msra.mxu0 0.0
      %1186 = vmatprep.subr.mxu0 0.0
      %1187 = vmatpush1.msra.mxu0 0.0
      %1188 = vmatprep.subr.mxu0 0.0
      %1189 = vmatpush1.msra.mxu0 0.0
      %1190 = vmatprep.subr.mxu0 0.0
      %1191 = vmatpush1.msra.mxu0 0.0
      %1192 = vmatprep.subr.mxu0 0.0
      %1193 = vmatpush1.msra.mxu0 0.0
      %1194 = vmatprep.subr.mxu0 0.0
      %1195 = vmatpush1.msra.mxu0 0.0
      %1196 = vmatprep.subr.mxu0 0.0
      %1197 = vmatpush1.msra.mxu0 0.0
      %1198 = vmatprep.subr.mxu0 0.0
      %1199 = vmatpush1.msra.mxu0 0.0
      %1200 = vmatprep.subr.mxu0 0.0
      %1201 = vmatpush1.msra.mxu0 0.0
      %1202 = vmatprep.subr.mxu0 0.0
      %1203 = vmatpush1.msra.mxu0 0.0
      %1204 = vmatprep.subr.mxu0 0.0
      %1205 = vmatpush1.msra.mxu0 0.0
      %1206 = vmatprep.subr.mxu0 0.0
      %1207 = vmatpush1.msra.mxu0 0.0
      %1208 = vmatprep.subr.mxu0 0.0
      %1209 = vmatpush1.msra.mxu0 0.0
      %1210 = vmatprep.subr.mxu0 0.0
      %1211 = vmatpush1.msra.mxu0 0.0
      %1212 = vmatprep.subr.mxu0 0.0
      %1213 = vmatpush1.msra.mxu0 0.0
      %1214 = vmatprep.subr.mxu0 0.0
      %1215 = vmatpush1.msra.mxu0 0.0
      %1216 = vmatprep.subr.mxu0 0.0
      %1217 = vmatpush1.msra.mxu0 0.0
      %1218 = vmatprep.subr.mxu0 0.0
      %1219 = vmatpush1.msra.mxu0 0.0
      %1220 = vmatprep.mubr.f32.mxu0 0.0
      %1221 = vmatmul.mubr.f32.gmra.mrb[0].mxu0 %v1151
      %v1222 = vpop.f32.mrb[0].mxu0
      %v1223 = vadd.f32 0.0, %v1222
      %v1224 = vpop.f32.mrb[0].mxu0
      %1225 = vmatprep.mubr.f32.mxu0 0.0
      %1226 = vmatmul.mubr.f32.gmra.mrb[0].mxu0 %v1154
      %v1227 = vpop.f32.mrb[0].mxu0
      %v1228 = vadd.f32 0.0, %v1227
      %v1229 = vpop.f32.mrb[0].mxu0
      %1230 = vdwg.mxu0
      %1233 = vrot.lane.b32.xlu0 %v569, 64
      %v1234 = vpop.permute.xlu0 %1233
      %1235 = vrot.lane.b32.xlu0 %v574, 64
      %v1236 = vpop.permute.xlu0 %1235
      %1241 = vrot.lane.b32.xlu0 %v779, 64
      %v1242 = vpop.permute.xlu0 %1241
      %1243 = vrot.lane.b32.xlu0 %v784, 64
      %v1244 = vpop.permute.xlu0 %1243
      %1249 = vrot.lane.b32.xlu0 %v1001, 64
      %v1250 = vpop.permute.xlu0 %1249
      %1251 = vrot.lane.b32.xlu0 %v1006, 64
      %v1252 = vpop.permute.xlu0 %1251
      %1257 = vrot.lane.b32.xlu0 %v1223, 64
      %v1258 = vpop.permute.xlu0 %1257
      %1259 = vrot.lane.b32.xlu0 %v1228, 64
      %v1260 = vpop.permute.xlu0 %1259
      %vm1263 = vcmask 523264
      %v1264 = vsel %vm1263, %v462, %v1234
      %v1265 = vsel %vm1263, %v467, %v1236
      %v1266 = vsel %vm1263, %v674, %v1242
      %v1267 = vsel %vm1263, %v679, %v1244
      %v1268 = vsel %vm1263, %v890, %v1250
      %v1269 = vsel %vm1263, %v895, %v1252
      %v1270 = vsel %vm1263, %v1112, %v1258
      %v1271 = vsel %vm1263, %v1117, %v1260
      %1272 = vst [vmem:[%s210] sm:$0xff] %v1264
      %1273 = vst [vmem:[%s210 + $0x8] sm:$0xff] %v1266
      %1274 = vst [vmem:[%s210 + $0x10] sm:$0xff] %v1268
      %1275 = vst [vmem:[%s210 + $0x18] sm:$0xff] %v1270
      %1276 = vst [vmem:[%s210 + $0x20] sm:$0xff] %v1265
      %1277 = vst [vmem:[%s210 + $0x28] sm:$0xff] %v1267
      %1278 = vst [vmem:[%s210 + $0x30] sm:$0xff] %v1269
      %1279 = vst [vmem:[%s210 + $0x38] sm:$0xff] %v1271
      %p1280 = scmp.lt.s32.totalorder %s14, 1
      %s1281 = scalar_select %p1280, %s14, 1
      %s1282 = smul.addr %s1281, 8
      %s1283 = smul.addr %s1282, 8
      %s1284 = scalar_lea.vmem %s3, %s1283
      // Predicated region
      $region33: #{random_shifts_aug.1} parent=31 // pred_check
        %p1285 = pneg %p110
      $region34: #{random_shifts_aug.1} parent=31 // pred_check_branch
        %1287 = sbr.rel (%p1285) target = $region36
      $region35: #{random_shifts_aug.1} parent=31 // pred_region
        _
      $region36: #{random_shifts_aug.1} parent=31 // pred_fallthru
        _
    $region32: #{random_shifts_aug.1} parent=5 // pred_fallthru
      _
    %p1288 = scmp.le.s32.totalorder 2, %s9
    // Predicated region
    $region37: #{random_shifts_aug.1} parent=5 // pred_check
      %p1289 = pneg %p1288
    $region38: #{random_shifts_aug.1} parent=5 // pred_check_branch
      %1291 = sbr.rel (%p1289) target = $region40
    $region39: #{random_shifts_aug.1} parent=5 // pred_region
      %s1292 = ssub.s32 %s9, 2
      // Predicated region
      $region41: #{random_shifts_aug.1} parent=39 // pred_check
        %p1293 = pneg %p116
      $region42: #{random_shifts_aug.1} parent=39 // pred_check_branch
        %1295 = sbr.rel (%p1293) target = $region44
      $region43: #{random_shifts_aug.1} parent=39 // pred_region
        %p1296 = scmp.lt.s32.totalorder %s15, 1
        %s1297 = scalar_select %p1296, %s15, 1
        %s1298 = smul.addr %s1297, 8
        %s1299 = smul.addr %s1298, 8
        %s1300 = scalar_lea.vmem %s3, %s1299
      $region44: #{random_shifts_aug.1} parent=39 // pred_fallthru
        _
    $region40: #{random_shifts_aug.1} parent=5 // pred_fallthru
      _
  $region6: #{random_shifts_aug.1} parent=0 // loop_footer
    %s13 = sadd.s32 1, %s9
  $region7: #{random_shifts_aug.1} parent=0 // loop_footer_branch
    %8 = sbr.rel target = $region3
  $region8: #{random_shifts_aug.1} parent=0 // loop_exit
    _

</llo_original>
